<compile_context>
chip_gen: v5e
topology: v5e:2x2
jax: 0.10.0
libtpu: 0.0.40
codegen_flags: <defaults>
</compile_context>

<pallas_src>
import functools

import jax
import jax.numpy as jnp
from jax import lax
from jax.experimental import pallas as pl
from jax.experimental.pallas import tpu as pltpu


def _get_padding(kernel_size):
    return (kernel_size - 1) // 2


# Switch from materialized im2col to K*K per-tap accumulating dots once the per-group
# contraction depth alone already fills the MXU contraction dimension.
_PER_TAP_MIN_CIG = 128


def _pick_row_tile(Ho, stride, pad, requested=None):
    """Largest divisor of Ho that is <= target and keeps TH*stride >= pad.

    Exact divisors avoid partial output blocks; TH*stride >= pad guarantees that only the
    first (last) row tile ever needs top (bottom) zero-padding, which the kernel relies on.
    """
    target = requested if requested is not None else 8
    target = max(1, min(int(target), Ho))
    divs = [d for d in range(1, Ho + 1) if Ho % d == 0 and d * stride >= pad]
    le = [d for d in divs if d <= target]
    return max(le) if le else min(divs)


def _bn_act_conv_kernel(x_ref, scale_ref, shift_ref, w_ref, o_ref, *scratch,
                        K, stride, groups, pad, H, W, Wo, Cin, Cout,
                        TH, RT, TH_in, walign, c_last, per_tap, cdtype):
    # x_ref:     (1, H, W, Cin)  one full NHWC image (resident across the row-tile axis)
    # scale_ref: (1, Cin)        folded BN scale = gamma * rsqrt(var + eps)
    # shift_ref: (1, Cin)        folded BN shift = beta - mean * scale
    # w_ref:     per-path conv weight layout (see wrapper)
    # o_ref:     (1, 1, TH*Wo, Cout) one output row-slab, stored lane-dense in one shot
    # scratch:   optional (TH_in, W_al, Cin) halo'd activation buffer (only when pad > 0)
    cig = Cin // groups
    cog = Cout // groups
    rt = pl.program_id(1)
    row0 = rt * (TH * stride)              # first padded input row needed by this slab
    W_al = walign + W + pad
    he = (TH - 1) * stride + 1             # row span of one tap slice (pre-striding)
    we = (Wo - 1) * stride + 1             # col span of one tap slice (pre-striding)

    def bn_relu(x):
        # Folded BatchNorm (inference) + ReLU. Math stays in the input precision
        # (bf16 VALU on v6e/v7x for bf16 inputs, f32 otherwise), cast to the MXU dtype.
        return jnp.maximum(x * scale_ref[...] + shift_ref[...], 0).astype(cdtype)

    if pad == 0:
        # No halo needed (1x1 conv): skip the scratch round-trip entirely.
        ablk = bn_relu(x_ref[0, pl.ds(row0, TH_in), :, :])          # (TH_in, W, Cin)
    else:
        sref = scratch[0]                                           # (TH_in, W_al, Cin)

        def fill(first, last):
            n_top = pad if first else 0
            n_bot = c_last if last else 0
            n_copy = TH_in - n_top - n_bot
            src0 = row0 - pad + n_top                               # == 0 on the first tile
            # Zero ONLY the halo strips; the interior is fully overwritten below.
            sref[:, 0:walign, :] = jnp.zeros((TH_in, walign, Cin), cdtype)
            sref[:, walign + W:W_al, :] = jnp.zeros((TH_in, pad, Cin), cdtype)
            if n_top > 0:
                sref[0:n_top, walign:walign + W, :] = jnp.zeros((n_top, W, Cin), cdtype)
            if n_bot > 0:
                sref[TH_in - n_bot:TH_in, walign:walign + W, :] = \
                    jnp.zeros((n_bot, W, Cin), cdtype)
            xb = x_ref[0, pl.ds(src0, n_copy), :, :]
            # Sublane-aligned interior store (W offset = walign, a multiple of 8).
            sref[n_top:n_top + n_copy, walign:walign + W, :] = bn_relu(xb)

        if RT == 1:
            fill(True, True)
        else:
            @pl.when(rt == 0)
            def _():
                fill(True, False)

            if RT > 2:
                @pl.when(jnp.logical_and(rt > 0, rt < RT - 1))
                def _():
                    fill(False, False)

            @pl.when(rt == RT - 1)
            def _():
                fill(False, True)

        ablk = sref[...]                                            # (TH_in, W_al, Cin)

    M = TH * Wo

    def tap(block, kh, kw):
        # One (kh, kw) conv tap window over this slab: (TH, Wo, channels).
        c0 = walign - pad + kw
        cch = block.shape[-1]
        return lax.slice(block, (kh, c0, 0), (kh + he, c0 + we, cch),
                         (stride, stride, 1))

    if groups == 1:
        if per_tap:
            # Deep-enough contraction per tap: K*K accumulating MXU dots, f32 in-register
            # accumulator; no K*K-sized im2col temporary.
            acc = None
            for kh in range(K):
                for kw in range(K):
                    lhs = tap(ablk, kh, kw).reshape(M, Cin)
                    d = jnp.dot(lhs, w_ref[kh, kw], preferred_element_type=jnp.float32)
                    acc = d if acc is None else acc + d
        else:
            # Small cig: fuse all taps into one deep-contraction matmul (im2col).
            if K == 1:
                cols = tap(ablk, 0, 0).reshape(M, Cin)
            else:
                cols = jnp.concatenate(
                    [tap(ablk, kh, kw) for kh in range(K) for kw in range(K)],
                    axis=-1).reshape(M, K * K * Cin)
            acc = jnp.dot(cols, w_ref[...], preferred_element_type=jnp.float32)
        out = acc                                                    # (M, Cout) f32
    else:
        # Grouped conv: one channel slice per group (not per tap), deep im2col per group,
        # results concatenated once so the final store is a single lane-dense write.
        # TODO(synk): for very large `groups` a batched contraction layout would avoid the
        # lane-misaligned per-group slices; DPN-style groups (small cig) stay on im2col.
        parts = []
        for g in range(groups):
            blk_g = ablk[:, :, g * cig:(g + 1) * cig]
            if K == 1:
                cols = tap(blk_g, 0, 0).reshape(M, cig)
            else:
                cols = jnp.concatenate(
                    [tap(blk_g, kh, kw) for kh in range(K) for kw in range(K)],
                    axis=-1).reshape(M, K * K * cig)
            parts.append(jnp.dot(cols, w_ref[g], preferred_element_type=jnp.float32))
        out = jnp.concatenate(parts, axis=-1)                        # (M, Cout) f32

    o_ref[...] = out[None, None].astype(o_ref.dtype)                 # one lane-dense store


def bn_act_conv_nhwc(x_nhwc, gamma, beta, running_mean, running_var, weight, *,
                     kernel_size, stride=1, groups=1, eps=1e-3,
                     prefer_bfloat16_compute=False, row_tile=None):
    """Fused BN(eval)->ReLU->Conv2d, NHWC in / NHWC out."""
    N, H, W, Cin = x_nhwc.shape
    Cout = weight.shape[0]
    K = kernel_size
    pad = _get_padding(K)
    Ho = (H + 2 * pad - K) // stride + 1
    Wo = (W + 2 * pad - K) // stride + 1
    cig = Cin // groups
    cog = Cout // groups

    in_bf16 = (x_nhwc.dtype == jnp.bfloat16)
    # MXU dtype: bf16 inputs stay bf16; f32 inputs may opt into bf16 compute (v5e/v6e lever).
    cdtype = jnp.bfloat16 if (in_bf16 or prefer_bfloat16_compute) else jnp.float32
    # BN+ReLU prologue dtype: bf16 only when the input itself is bf16.
    pdtype = jnp.bfloat16 if in_bf16 else jnp.float32

    f32 = jnp.float32
    scale = gamma.astype(f32) * lax.rsqrt(running_var.astype(f32) + eps)
    shift = beta.astype(f32) - running_mean.astype(f32) * scale
    scale = scale.reshape(1, Cin).astype(pdtype)
    shift = shift.reshape(1, Cin).astype(pdtype)

    TH = _pick_row_tile(Ho, stride, pad, row_tile)   # output rows per grid step
    RT = Ho // TH
    TH_in = (TH - 1) * stride + K                    # padded input rows needed per step
    walign = ((pad + 7) // 8) * 8 if pad > 0 else 0  # sublane-aligned interior offset
    W_al = walign + W + pad
    c_last = max(0, (RT - 1) * TH * stride + TH_in - (H + pad))  # bottom halo rows, last tile
    per_tap = (groups == 1 and K > 1 and cig >= _PER_TAP_MIN_CIG)

    # PyTorch conv weight (Cout, Cin//groups, K, K) -> per-path kernel layout.
    if groups == 1:
        w_hwio = jnp.transpose(weight, (2, 3, 1, 0)).astype(cdtype)        # (K,K,Cin,Cout)
        w = w_hwio if per_tap else w_hwio.reshape(K * K * Cin, Cout)
    else:
        w = jnp.transpose(weight.reshape(groups, cog, cig, K, K),
                          (0, 3, 4, 2, 1)).reshape(groups, K * K * cig, cog).astype(cdtype)

    kernel = functools.partial(_bn_act_conv_kernel, K=K, stride=stride, groups=groups,
                               pad=pad, H=H, W=W, Wo=Wo, Cin=Cin, Cout=Cout,
                               TH=TH, RT=RT, TH_in=TH_in, walign=walign,
                               c_last=c_last, per_tap=per_tap, cdtype=cdtype)
    M = TH * Wo

    def _invariant_spec(shape, index_map):
        # Grid-invariant operands: single-buffered (never re-fetched) to save VMEM.
        try:
            return pl.BlockSpec(shape, index_map, pipeline_mode=pl.Buffered(1))
        except Exception:  # pragma: no cover - older BlockSpec without pipeline_mode
            return pl.BlockSpec(shape, index_map)

    in_specs = [
        pl.BlockSpec((1, H, W, Cin), lambda n, rt: (n, 0, 0, 0)),   # image (resident over rt)
        _invariant_spec((1, Cin), lambda n, rt: (0, 0)),            # BN scale
        _invariant_spec((1, Cin), lambda n, rt: (0, 0)),            # BN shift
        _invariant_spec(w.shape, lambda n, rt: (0,) * w.ndim),      # conv weights
    ]
    out_specs = pl.BlockSpec((1, 1, M, Cout), lambda n, rt: (n, rt, 0, 0))
    scratch = [pltpu.VMEM((TH_in, W_al, Cin), cdtype)] if pad > 0 else []

    xbytes = jnp.dtype(x_nhwc.dtype).itemsize
    cbytes = jnp.dtype(cdtype).itemsize
    est = (2 * H * W * Cin * xbytes                 # input block (double buffered)
           + 2 * M * Cout * xbytes                  # output block (double buffered)
           + w.size * cbytes + 2 * Cin * 4          # resident weights + BN vectors
           + TH_in * W_al * Cin * cbytes            # halo'd activation scratch
           + M * K * K * cig * cbytes               # im2col / tap temporaries
           + M * Cout * 4)                          # f32 accumulator
    vmem_limit = int(min(max(2 * est + (4 << 20), 32 << 20), 48 << 20))

    cost = pl.CostEstimate(
        flops=2 * N * Ho * Wo * Cout * K * K * cig,
        transcendentals=0,
        bytes_accessed=(x_nhwc.size * xbytes + w.size * cbytes
                        + N * Ho * Wo * Cout * xbytes))

    out = pl.pallas_call(
        kernel,
        out_shape=jax.ShapeDtypeStruct((N, RT, M, Cout), x_nhwc.dtype),
        grid=(N, RT),
        in_specs=in_specs,
        out_specs=out_specs,
        scratch_shapes=scratch,
        compiler_params=pltpu.CompilerParams(
            dimension_semantics=("parallel", "parallel"),
            vmem_limit_bytes=vmem_limit),
        cost_estimate=cost,
    )(x_nhwc, scale, shift, w)
    # (N, RT, TH*Wo, Cout) -> (N, Ho, Wo, Cout): free row-major reshape outside the kernel.
    return out.reshape(N, Ho, Wo, Cout)


def bn_act_conv(x, gamma, beta, running_mean, running_var, weight, *,
                kernel_size, stride=1, groups=1, eps=1e-3,
                prefer_bfloat16_compute=False, row_tile=None):
    """Forward of _BnActConvo: NCHW in / NCHW out (PyTorch convention).
    x may be a tuple of NCHW arrays (concatenated on channels, like the module)."""
    if isinstance(x, (tuple, list)):
        x = jnp.concatenate(x, axis=1)
    # NCHW<->NHWC transposes are the only remaining full-tensor XLA passes; a network built
    # from these kernels should stay NHWC end-to-end and call bn_act_conv_nhwc directly.
    x_nhwc = jnp.transpose(x, (0, 2, 3, 1))
    out_nhwc = bn_act_conv_nhwc(x_nhwc, gamma, beta, running_mean, running_var, weight,
                                kernel_size=kernel_size, stride=stride, groups=groups,
                                eps=eps, prefer_bfloat16_compute=prefer_bfloat16_compute,
                                row_tile=row_tile)
    return jnp.transpose(out_nhwc, (0, 3, 1, 2))


def _reference(x, gamma, beta, running_mean, running_var, weight,
               *, kernel_size, stride=1, groups=1, eps=1e-3):
    """Pure-JAX (XLA) reference: BN(eval) -> ReLU -> Conv2d, NCHW."""
    if isinstance(x, (tuple, list)):
        x = jnp.concatenate(x, axis=1)
    c = x.shape[1]
    sh = (1, c, 1, 1)
    a = (x - running_mean.reshape(sh)) * lax.rsqrt(running_var.reshape(sh) + eps)
    a = a * gamma.reshape(sh) + beta.reshape(sh)
    a = jnp.maximum(a, 0.0)
    p = _get_padding(kernel_size)
    return lax.conv_general_dilated(
        a, weight, window_strides=(stride, stride), padding=[(p, p), (p, p)],
        dimension_numbers=("NCHW", "OIHW", "NCHW"), feature_group_count=groups,
        precision=lax.Precision.HIGHEST)


if __name__ == "__main__":
    key = jax.random.PRNGKey(0)
    H = W = 16

    def make_case(k, N, Cin, Cout, K, groups):
        k_x, k_w, k_g, k_b, k_m, k_v = jax.random.split(k, 6)
        x = jax.random.normal(k_x, (N, Cin, H, W), jnp.float32)
        w = 0.1 * jax.random.normal(k_w, (Cout, Cin // groups, K, K), jnp.float32)
        gamma = 1.0 + 0.1 * jax.random.normal(k_g, (Cin,), jnp.float32)
        beta = 0.1 * jax.random.normal(k_b, (Cin,), jnp.float32)
        mean = 0.1 * jax.random.normal(k_m, (Cin,), jnp.float32)
        var = 1.0 + 0.1 * jax.random.uniform(k_v, (Cin,), jnp.float32)
        return x, w, gamma, beta, mean, var

    # (name, N, Cin, Cout, K, groups, stride, dtype, tol, tuple_input, extra_kwargs)
    cases = [
        ("3x3_s1_g1_f32",         2, 4,   8,   3, 1, 1, jnp.float32,  5e-4, False, {}),
        ("1x1_s1_g1_f32",         2, 4,   8,   1, 1, 1, jnp.float32,  5e-4, False, {}),
        ("3x3_s2_g2_f32",         2, 8,   16,  3, 2, 2, jnp.float32,  5e-4, True,  {}),
        ("3x3_s1_g1_bf16",        2, 4,   8,   3, 1, 1, jnp.bfloat16, 3e-2, False, {}),
        ("3x3_s1_g1_rowtile4",    2, 4,   8,   3, 1, 1, jnp.float32,  5e-4, False,
         {"row_tile": 4}),
        ("3x3_s1_g1_c128_pertap", 1, 128, 128, 3, 1, 1, jnp.float32,  2e-3, False, {}),
        ("3x3_s1_bf16_compute",   2, 16,  16,  3, 1, 1, jnp.float32,  3e-2, False,
         {"prefer_bfloat16_compute": True}),
    ]

    for (name, N, Cin, Cout, K, groups, stride, dtype, tol, as_tuple, kw) in cases:
        key, sub = jax.random.split(key)
        x_f32, w_f32, gamma, beta, mean, var = make_case(sub, N, Cin, Cout, K, groups)
        x = x_f32.astype(dtype)
        w = w_f32.astype(dtype)
        xin = (x[:, :Cin // 2], x[:, Cin // 2:]) if as_tuple else x

        out = bn_act_conv(xin, gamma, beta, mean, var, w,
                          kernel_size=K, stride=stride, groups=groups, eps=1e-3, **kw)
        out = jax.block_until_ready(out)

        ref = _reference(x.astype(jnp.float32), gamma, beta, mean, var,
                         w.astype(jnp.float32), kernel_size=K, stride=stride,
                         groups=groups, eps=1e-3)

        p = _get_padding(K)
        Ho = (H + 2 * p - K) // stride + 1
        Wo = (W + 2 * p - K) // stride + 1
        assert out.shape == (N, Cout, Ho, Wo), (name, out.shape)
        err = float(jnp.max(jnp.abs(out.astype(jnp.float32) - ref)))
        assert jnp.allclose(out.astype(jnp.float32), ref, rtol=tol, atol=tol), (name, err)

    print("KERNEL_OK")
</pallas_src>

<mosaic_0001>
module attributes {stable_mosaic.version = 11 : i64} {
  func.func @_bn_act_conv_kernel(%arg0: i32, %arg1: i32, %arg2: memref<1x16x16x4xf32, #tpu.memory_space<vmem>>, %arg3: memref<1x4xf32, #tpu.memory_space<vmem>>, %arg4: memref<1x4xf32, #tpu.memory_space<vmem>>, %arg5: memref<36x8xf32, #tpu.memory_space<vmem>>, %arg6: memref<1x1x128x8xf32, #tpu.memory_space<vmem>>, %arg7: memref<10x25x4xf32, #tpu.memory_space<vmem>>) attributes {dimension_semantics = [#tpu.dimension_semantics<parallel>, #tpu.dimension_semantics<parallel>], iteration_bounds = array<i64: 2, 2>, scalar_prefetch = 0 : i64, scratch_operands = 1 : i64, tpu.core_type = #tpu.core_type<tc>, window_params = [{transform_indices = @transform_0, window_bounds = array<i64: 1, 16, 16, 4>}, {pipeline_mode = #tpu.pipeline_mode<synchronous>, transform_indices = @transform_1, window_bounds = array<i64: 1, 4>}, {pipeline_mode = #tpu.pipeline_mode<synchronous>, transform_indices = @transform_2, window_bounds = array<i64: 1, 4>}, {pipeline_mode = #tpu.pipeline_mode<synchronous>, transform_indices = @transform_3, window_bounds = array<i64: 36, 8>}, {transform_indices = @transform_4, window_bounds = array<i64: 1, 1, 128, 8>}]} {
    %c8_i32 = arith.constant 8 : i32
    %0 = arith.muli %arg1, %c8_i32 : i32
    %c0_i32 = arith.constant 0 : i32
    %1 = arith.cmpi eq, %arg1, %c0_i32 : i32
    %2 = arith.extui %1 : i1 to i32
    %c0_i32_0 = arith.constant 0 : i32
    %3 = arith.cmpi ne, %2, %c0_i32_0 : i32
    scf.if %3 {
      %c1_i32_10 = arith.constant 1 : i32
      %23 = arith.subi %0, %c1_i32_10 : i32
      %c1_i32_11 = arith.constant 1 : i32
      %24 = arith.addi %23, %c1_i32_11 : i32
      %cst_12 = arith.constant 0.000000e+00 : f32
      %25 = vector.broadcast %cst_12 : f32 to vector<10x8x4xf32>
      %c0_13 = arith.constant 0 : index
      %c0_14 = arith.constant 0 : index
      %c0_15 = arith.constant 0 : index
      %26 = vector.load %arg7[%c0_13, %c0_14, %c0_15] : memref<10x25x4xf32, #tpu.memory_space<vmem>>, vector<10x8x4xf32>
      tpu.vector_store %arg7[%c0_13, %c0_14, %c0_15], %25 {strides = array<i32>} : memref<10x25x4xf32, #tpu.memory_space<vmem>>, vector<10x8x4xf32>,
      %cst_16 = arith.constant 0.000000e+00 : f32
      %27 = vector.broadcast %cst_16 : f32 to vector<10x1x4xf32>
      %c0_17 = arith.constant 0 : index
      %c24 = arith.constant 24 : index
      %c0_18 = arith.constant 0 : index
      %28 = vector.load %arg7[%c0_17, %c24, %c0_18] : memref<10x25x4xf32, #tpu.memory_space<vmem>>, vector<10x1x4xf32>
      tpu.vector_store %arg7[%c0_17, %c24, %c0_18], %27 {strides = array<i32>} : memref<10x25x4xf32, #tpu.memory_space<vmem>>, vector<10x1x4xf32>,
      %cst_19 = arith.constant 0.000000e+00 : f32
      %29 = vector.broadcast %cst_19 : f32 to vector<1x16x4xf32>
      %c0_20 = arith.constant 0 : index
      %c8 = arith.constant 8 : index
      %c0_21 = arith.constant 0 : index
      %30 = vector.load %arg7[%c0_20, %c8, %c0_21] : memref<10x25x4xf32, #tpu.memory_space<vmem>>, vector<1x16x4xf32>
      tpu.vector_store %arg7[%c0_20, %c8, %c0_21], %29 {strides = array<i32>} : memref<10x25x4xf32, #tpu.memory_space<vmem>>, vector<1x16x4xf32>,
      %c0_22 = arith.constant 0 : index
      %31 = arith.index_cast %24 : i32 to index
      %c0_23 = arith.constant 0 : index
      %c0_24 = arith.constant 0 : index
      %32 = vector.load %arg2[%c0_22, %31, %c0_23, %c0_24] : memref<1x16x16x4xf32, #tpu.memory_space<vmem>>, vector<1x9x16x4xf32>
      %33 = vector.shape_cast %32 : vector<1x9x16x4xf32> to vector<9x16x4xf32>
      %c0_25 = arith.constant 0 : index
      %c0_26 = arith.constant 0 : index
      %34 = vector.load %arg3[%c0_25, %c0_26] : memref<1x4xf32, #tpu.memory_space<vmem>>, vector<1x4xf32>
      %35 = vector.shape_cast %34 : vector<1x4xf32> to vector<1x1x4xf32>
      %36 = vector.broadcast %35 : vector<1x1x4xf32> to vector<9x16x4xf32>
      %37 = arith.mulf %33, %36 : vector<9x16x4xf32>
      %c0_27 = arith.constant 0 : index
      %c0_28 = arith.constant 0 : index
      %38 = vector.load %arg4[%c0_27, %c0_28] : memref<1x4xf32, #tpu.memory_space<vmem>>, vector<1x4xf32>
      %39 = vector.shape_cast %38 : vector<1x4xf32> to vector<1x1x4xf32>
      %40 = vector.broadcast %39 : vector<1x1x4xf32> to vector<9x16x4xf32>
      %41 = arith.addf %37, %40 : vector<9x16x4xf32>
      %cst_29 = arith.constant 0.000000e+00 : f32
      %42 = vector.broadcast %cst_29 : f32 to vector<9x16x4xf32>
      %43 = arith.maximumf %41, %42 : vector<9x16x4xf32>
      %c1 = arith.constant 1 : index
      %c8_30 = arith.constant 8 : index
      %c0_31 = arith.constant 0 : index
      %44 = vector.load %arg7[%c1, %c8_30, %c0_31] : memref<10x25x4xf32, #tpu.memory_space<vmem>>, vector<9x16x4xf32>
      tpu.vector_store %arg7[%c1, %c8_30, %c0_31], %43 {strides = array<i32>} : memref<10x25x4xf32, #tpu.memory_space<vmem>>, vector<9x16x4xf32>,
    } else {
    }
    %c1_i32 = arith.constant 1 : i32
    %4 = arith.cmpi eq, %arg1, %c1_i32 : i32
    %5 = arith.extui %4 : i1 to i32
    %c0_i32_1 = arith.constant 0 : i32
    %6 = arith.cmpi ne, %5, %c0_i32_1 : i32
    scf.if %6 {
      %c1_i32_10 = arith.constant 1 : i32
      %23 = arith.subi %0, %c1_i32_10 : i32
      %c0_i32_11 = arith.constant 0 : i32
      %24 = arith.addi %23, %c0_i32_11 : i32
      %cst_12 = arith.constant 0.000000e+00 : f32
      %25 = vector.broadcast %cst_12 : f32 to vector<10x8x4xf32>
      %c0_13 = arith.constant 0 : index
      %c0_14 = arith.constant 0 : index
      %c0_15 = arith.constant 0 : index
      %26 = vector.load %arg7[%c0_13, %c0_14, %c0_15] : memref<10x25x4xf32, #tpu.memory_space<vmem>>, vector<10x8x4xf32>
      tpu.vector_store %arg7[%c0_13, %c0_14, %c0_15], %25 {strides = array<i32>} : memref<10x25x4xf32, #tpu.memory_space<vmem>>, vector<10x8x4xf32>,
      %cst_16 = arith.constant 0.000000e+00 : f32
      %27 = vector.broadcast %cst_16 : f32 to vector<10x1x4xf32>
      %c0_17 = arith.constant 0 : index
      %c24 = arith.constant 24 : index
      %c0_18 = arith.constant 0 : index
      %28 = vector.load %arg7[%c0_17, %c24, %c0_18] : memref<10x25x4xf32, #tpu.memory_space<vmem>>, vector<10x1x4xf32>
      tpu.vector_store %arg7[%c0_17, %c24, %c0_18], %27 {strides = array<i32>} : memref<10x25x4xf32, #tpu.memory_space<vmem>>, vector<10x1x4xf32>,
      %cst_19 = arith.constant 0.000000e+00 : f32
      %29 = vector.broadcast %cst_19 : f32 to vector<1x16x4xf32>
      %c9 = arith.constant 9 : index
      %c8 = arith.constant 8 : index
      %c0_20 = arith.constant 0 : index
      %30 = vector.load %arg7[%c9, %c8, %c0_20] : memref<10x25x4xf32, #tpu.memory_space<vmem>>, vector<1x16x4xf32>
      tpu.vector_store %arg7[%c9, %c8, %c0_20], %29 {strides = array<i32>} : memref<10x25x4xf32, #tpu.memory_space<vmem>>, vector<1x16x4xf32>,
      %c0_21 = arith.constant 0 : index
      %31 = arith.index_cast %24 : i32 to index
      %c0_22 = arith.constant 0 : index
      %c0_23 = arith.constant 0 : index
      %32 = vector.load %arg2[%c0_21, %31, %c0_22, %c0_23] : memref<1x16x16x4xf32, #tpu.memory_space<vmem>>, vector<1x9x16x4xf32>
      %33 = vector.shape_cast %32 : vector<1x9x16x4xf32> to vector<9x16x4xf32>
      %c0_24 = arith.constant 0 : index
      %c0_25 = arith.constant 0 : index
      %34 = vector.load %arg3[%c0_24, %c0_25] : memref<1x4xf32, #tpu.memory_space<vmem>>, vector<1x4xf32>
      %35 = vector.shape_cast %34 : vector<1x4xf32> to vector<1x1x4xf32>
      %36 = vector.broadcast %35 : vector<1x1x4xf32> to vector<9x16x4xf32>
      %37 = arith.mulf %33, %36 : vector<9x16x4xf32>
      %c0_26 = arith.constant 0 : index
      %c0_27 = arith.constant 0 : index
      %38 = vector.load %arg4[%c0_26, %c0_27] : memref<1x4xf32, #tpu.memory_space<vmem>>, vector<1x4xf32>
      %39 = vector.shape_cast %38 : vector<1x4xf32> to vector<1x1x4xf32>
      %40 = vector.broadcast %39 : vector<1x1x4xf32> to vector<9x16x4xf32>
      %41 = arith.addf %37, %40 : vector<9x16x4xf32>
      %cst_28 = arith.constant 0.000000e+00 : f32
      %42 = vector.broadcast %cst_28 : f32 to vector<9x16x4xf32>
      %43 = arith.maximumf %41, %42 : vector<9x16x4xf32>
      %c0_29 = arith.constant 0 : index
      %c8_30 = arith.constant 8 : index
      %c0_31 = arith.constant 0 : index
      %44 = vector.load %arg7[%c0_29, %c8_30, %c0_31] : memref<10x25x4xf32, #tpu.memory_space<vmem>>, vector<9x16x4xf32>
      tpu.vector_store %arg7[%c0_29, %c8_30, %c0_31], %43 {strides = array<i32>} : memref<10x25x4xf32, #tpu.memory_space<vmem>>, vector<9x16x4xf32>,
    } else {
    }
    %c0 = arith.constant 0 : index
    %c0_2 = arith.constant 0 : index
    %c0_3 = arith.constant 0 : index
    %7 = vector.load %arg7[%c0, %c0_2, %c0_3] : memref<10x25x4xf32, #tpu.memory_space<vmem>>, vector<10x25x4xf32>
    %8 = vector.extract_strided_slice %7 {offsets = [0, 7, 0], sizes = [8, 16, 4], strides = [1, 1, 1]} : vector<10x25x4xf32> to vector<8x16x4xf32>
    %9 = vector.extract_strided_slice %7 {offsets = [0, 8, 0], sizes = [8, 16, 4], strides = [1, 1, 1]} : vector<10x25x4xf32> to vector<8x16x4xf32>
    %10 = vector.extract_strided_slice %7 {offsets = [0, 9, 0], sizes = [8, 16, 4], strides = [1, 1, 1]} : vector<10x25x4xf32> to vector<8x16x4xf32>
    %11 = vector.extract_strided_slice %7 {offsets = [1, 7, 0], sizes = [8, 16, 4], strides = [1, 1, 1]} : vector<10x25x4xf32> to vector<8x16x4xf32>
    %12 = vector.extract_strided_slice %7 {offsets = [1, 8, 0], sizes = [8, 16, 4], strides = [1, 1, 1]} : vector<10x25x4xf32> to vector<8x16x4xf32>
    %13 = vector.extract_strided_slice %7 {offsets = [1, 9, 0], sizes = [8, 16, 4], strides = [1, 1, 1]} : vector<10x25x4xf32> to vector<8x16x4xf32>
    %14 = vector.extract_strided_slice %7 {offsets = [2, 7, 0], sizes = [8, 16, 4], strides = [1, 1, 1]} : vector<10x25x4xf32> to vector<8x16x4xf32>
    %15 = vector.extract_strided_slice %7 {offsets = [2, 8, 0], sizes = [8, 16, 4], strides = [1, 1, 1]} : vector<10x25x4xf32> to vector<8x16x4xf32>
    %16 = vector.extract_strided_slice %7 {offsets = [2, 9, 0], sizes = [8, 16, 4], strides = [1, 1, 1]} : vector<10x25x4xf32> to vector<8x16x4xf32>
    %17 = tpu.concatenate %8, %9, %10, %11, %12, %13, %14, %15, %16 in 2 : vector<8x16x4xf32>, vector<8x16x4xf32>, vector<8x16x4xf32>, vector<8x16x4xf32>, vector<8x16x4xf32>, vector<8x16x4xf32>, vector<8x16x4xf32>, vector<8x16x4xf32>, vector<8x16x4xf32> -> vector<8x16x36xf32>
    %18 = vector.shape_cast %17 : vector<8x16x36xf32> to vector<128x36xf32>
    %c0_4 = arith.constant 0 : index
    %c0_5 = arith.constant 0 : index
    %19 = vector.load %arg5[%c0_4, %c0_5] : memref<36x8xf32, #tpu.memory_space<vmem>>, vector<36x8xf32>
    %cst = arith.constant dense<0.000000e+00> : vector<128x8xf32>
    %20 = tpu.matmul %18, %19, %cst {dimension_numbers = #tpu.dot_dimension_numbers<[1], [0], [0], [1], [0, 0, 1, 1], [], []>} : vector<128x36xf32>, vector<36x8xf32>, vector<128x8xf32> -> vector<128x8xf32>
    %21 = vector.shape_cast %20 : vector<128x8xf32> to vector<1x1x128x8xf32>
    %c0_6 = arith.constant 0 : index
    %c0_7 = arith.constant 0 : index
    %c0_8 = arith.constant 0 : index
    %c0_9 = arith.constant 0 : index
    %22 = vector.load %arg6[%c0_6, %c0_7, %c0_8, %c0_9] : memref<1x1x128x8xf32, #tpu.memory_space<vmem>>, vector<1x1x128x8xf32>
    tpu.vector_store %arg6[%c0_6, %c0_7, %c0_8, %c0_9], %21 {strides = array<i32>} : memref<1x1x128x8xf32, #tpu.memory_space<vmem>>, vector<1x1x128x8xf32>,
    return
  }
  func.func @transform_0(%arg0: i32, %arg1: i32) -> (i32, i32, i32, i32) {
    %c0_i32 = arith.constant 0 : i32
    %c0_i32_0 = arith.constant 0 : i32
    %c0_i32_1 = arith.constant 0 : i32
    %c0_i32_2 = arith.constant 0 : i32
    return %arg0, %c0_i32, %c0_i32_0, %c0_i32_1 : i32, i32, i32, i32
  }
  func.func @transform_1(%arg0: i32, %arg1: i32) -> (i32, i32) {
    %c0_i32 = arith.constant 0 : i32
    %c0_i32_0 = arith.constant 0 : i32
    %c0_i32_1 = arith.constant 0 : i32
    return %c0_i32, %c0_i32_0 : i32, i32
  }
  func.func @transform_2(%arg0: i32, %arg1: i32) -> (i32, i32) {
    %c0_i32 = arith.constant 0 : i32
    %c0_i32_0 = arith.constant 0 : i32
    %c0_i32_1 = arith.constant 0 : i32
    return %c0_i32, %c0_i32_0 : i32, i32
  }
  func.func @transform_3(%arg0: i32, %arg1: i32) -> (i32, i32) {
    %c0_i32 = arith.constant 0 : i32
    %c0_i32_0 = arith.constant 0 : i32
    %c0_i32_1 = arith.constant 0 : i32
    return %c0_i32, %c0_i32_0 : i32, i32
  }
  func.func @transform_4(%arg0: i32, %arg1: i32) -> (i32, i32, i32, i32) {
    %c0_i32 = arith.constant 0 : i32
    %c0_i32_0 = arith.constant 0 : i32
    %c0_i32_1 = arith.constant 0 : i32
    return %arg0, %arg1, %c0_i32, %c0_i32_0 : i32, i32, i32, i32
  }
}

</mosaic_0001>

<llo_original>
// kernel: tpu_custom_call.1
$region0: #{tpu_custom_call.1}
  #allocation0 [shape = 'u32[]', space=smem, size = 0x4, offset = 0x4, fixed_abs, tag = 'smem constant byte address 0x4 - core index']
  #allocation1 [shape = 'u32[72,128]{1,0:T(1,128)}', space=vmem, size = 0x9000, scoped, tag = 'internal scratch']
  #allocation2 [shape = 'f32[10,25,4]{2,1,0:T(8,128)}', space=vmem, size = 0x28000, scoped, tag = 'scratch operand']
  %s0 = inlined_call_operand.vmem [shape: f32[2,16,16,4], index: 0, kind: input, shape index: {}]
  %s1 = inlined_call_operand.vmem [shape: f32[1,4], index: 1, kind: input, shape index: {}]
  %s2 = inlined_call_operand.vmem [shape: f32[1,4], index: 2, kind: input, shape index: {}]
  %s3 = inlined_call_operand.vmem [shape: f32[36,8], index: 3, kind: input, shape index: {}]
  %s4 = inlined_call_operand.vmem [shape: f32[2,2,128,8], index: 4, kind: output, shape index: {}]
  %s5 = sld [smem:[#allocation0]]
  $region57: #{tpu_custom_call.1} parent=0
    _
  %s7 = ssub.s32 1, %s5
  %s8 = scalar_select 0, %s7, %s5
  loop: start=0, step=1, limit=6
  $region2: #{tpu_custom_call.1} parent=0 // loop_pre_header
    _
  $region3: #{tpu_custom_call.1} parent=0 // loop_header
    %s10 = sphi 0, %s14
    %p11 = scmp.ge.s32.totalorder %s10, 6
    %s17 = sphi 0, %s29
    %s18 = sphi 0, %s25
    %s19 = sphi 0, %s17
    %s20 = sphi 0, %s18
    %s21 = sphi 0, %s19
    %s22 = sphi 0, %s20
    %s32 = sphi 0, %s34
    %s35 = sphi 0, %s32
    %s36 = sphi 0, %s35
    %s52 = sphi 0, %s36
    %s56 = sphi 0, %s56
    %s58 = sphi 0, %s56
    %s59 = sphi 0, %s58
    %s73 = sphi 0, %s59
    %s77 = sphi 0, %s77
    %s79 = sphi 0, %s77
    %s80 = sphi 0, %s79
    %s94 = sphi 0, %s80
    %s98 = sphi 0, %s98
    %s100 = sphi 0, %s98
    %s101 = sphi 0, %s100
    %s115 = sphi 0, %s101
    %s123 = sphi 0, %s125
    %s126 = sphi 0, %s123
    %s127 = sphi 0, %s126
    %s143 = sphi 0, %s127
  $region4: #{tpu_custom_call.1} parent=0 // loop_header_branch
    %13 = sbr.rel (%p11) target = $region8
  $region5: #{tpu_custom_call.1} parent=0 // loop_body
    %s15 = ssub.s32 %s10, 1
    %s16 = ssub.s32 %s10, 2
    %s23 = sadd.s32 1, %s18
    %p24 = scmp.ge.s32.totalorder %s23, 2
    %s25 = scalar_select %p24, 0, %s23
    %s26 = sadd.s32 1, %s17
    %s27 = scalar_select %p24, %s26, %s17
    %p28 = scmp.ge.s32.totalorder %s27, 2
    %s29 = scalar_select %p28, 0, %s27
    %s30 = ssub.s32 %s17, %s29
    %p31 = scmp.eq.s32.totalorder %s30, 0
    %s33 = sadd.s32 %s32, 1
    %s34 = scalar_select %p31, %s32, %s33
    %p37 = pneg %p31
    %p38 = scmp.eq.s32.totalorder %s10, 3
    %p39 = por %p37, %p38
    %p40 = scmp.ne.s32.totalorder %s32, %s35
    %p41 = scmp.eq.s32.totalorder %s10, 0
    %p42 = por %p40, %p41
    %p43 = scmp.ne.s32.totalorder %s32, %s35
    %p44 = scmp.eq.s32.totalorder %s15, 3
    %p45 = por %p43, %p44
    %p46 = scmp.ne.s32.totalorder %s35, %s36
    %p47 = scmp.eq.s32.totalorder %s15, 0
    %p48 = por %p46, %p47
    %p49 = scmp.ne.s32.totalorder %s35, %s36
    %p50 = scmp.eq.s32.totalorder %s16, 3
    %p51 = por %p49, %p50
    %p53 = scmp.ne.s32.totalorder %s36, %s52
    %p54 = scmp.eq.s32.totalorder %s16, 0
    %p55 = por %p53, %p54
    %s57 = sadd.s32 %s56, 1
    %p60 = scmp.eq.s32.totalorder %s10, 3
    %p61 = scmp.ne.s32.totalorder %s56, %s58
    %p62 = scmp.eq.s32.totalorder %s10, 0
    %p63 = por %p61, %p62
    %p64 = scmp.ne.s32.totalorder %s56, %s58
    %p65 = scmp.eq.s32.totalorder %s15, 3
    %p66 = por %p64, %p65
    %p67 = scmp.ne.s32.totalorder %s58, %s59
    %p68 = scmp.eq.s32.totalorder %s15, 0
    %p69 = por %p67, %p68
    %p70 = scmp.ne.s32.totalorder %s58, %s59
    %p71 = scmp.eq.s32.totalorder %s16, 3
    %p72 = por %p70, %p71
    %p74 = scmp.ne.s32.totalorder %s59, %s73
    %p75 = scmp.eq.s32.totalorder %s16, 0
    %p76 = por %p74, %p75
    %s78 = sadd.s32 %s77, 1
    %p81 = scmp.eq.s32.totalorder %s10, 3
    %p82 = scmp.ne.s32.totalorder %s77, %s79
    %p83 = scmp.eq.s32.totalorder %s10, 0
    %p84 = por %p82, %p83
    %p85 = scmp.ne.s32.totalorder %s77, %s79
    %p86 = scmp.eq.s32.totalorder %s15, 3
    %p87 = por %p85, %p86
    %p88 = scmp.ne.s32.totalorder %s79, %s80
    %p89 = scmp.eq.s32.totalorder %s15, 0
    %p90 = por %p88, %p89
    %p91 = scmp.ne.s32.totalorder %s79, %s80
    %p92 = scmp.eq.s32.totalorder %s16, 3
    %p93 = por %p91, %p92
    %p95 = scmp.ne.s32.totalorder %s80, %s94
    %p96 = scmp.eq.s32.totalorder %s16, 0
    %p97 = por %p95, %p96
    %s99 = sadd.s32 %s98, 1
    %p102 = scmp.eq.s32.totalorder %s10, 3
    %p103 = scmp.ne.s32.totalorder %s98, %s100
    %p104 = scmp.eq.s32.totalorder %s10, 0
    %p105 = por %p103, %p104
    %p106 = scmp.ne.s32.totalorder %s98, %s100
    %p107 = scmp.eq.s32.totalorder %s15, 3
    %p108 = por %p106, %p107
    %p109 = scmp.ne.s32.totalorder %s100, %s101
    %p110 = scmp.eq.s32.totalorder %s15, 0
    %p111 = por %p109, %p110
    %p112 = scmp.ne.s32.totalorder %s100, %s101
    %p113 = scmp.eq.s32.totalorder %s16, 3
    %p114 = por %p112, %p113
    %p116 = scmp.ne.s32.totalorder %s101, %s115
    %p117 = scmp.eq.s32.totalorder %s16, 0
    %p118 = por %p116, %p117
    %s119 = ssub.s32 %s17, %s29
    %s120 = ssub.s32 %s18, %s25
    %s121 = sor.u32 %s119, %s120
    %p122 = scmp.eq.s32.totalorder %s121, 0
    %s124 = sadd.s32 %s123, 1
    %s125 = scalar_select %p122, %s123, %s124
    %p128 = pneg %p122
    %p129 = scmp.eq.s32.totalorder %s10, 3
    %p130 = por %p128, %p129
    %p131 = scmp.ne.s32.totalorder %s123, %s126
    %p132 = scmp.eq.s32.totalorder %s10, 0
    %p133 = por %p131, %p132
    %p134 = scmp.ne.s32.totalorder %s123, %s126
    %p135 = scmp.eq.s32.totalorder %s15, 3
    %p136 = por %p134, %p135
    %p137 = scmp.ne.s32.totalorder %s126, %s127
    %p138 = scmp.eq.s32.totalorder %s15, 0
    %p139 = por %p137, %p138
    %p140 = scmp.ne.s32.totalorder %s126, %s127
    %p141 = scmp.eq.s32.totalorder %s16, 3
    %p142 = por %p140, %p141
    %p144 = scmp.ne.s32.totalorder %s127, %s143
    %p145 = scmp.eq.s32.totalorder %s16, 0
    %p146 = por %p144, %p145
    %p147 = scmp.le.s32.totalorder 1, %s10
    %p148 = scmp.lt.s32.totalorder %s10, 5
    %p149 = pnand %p147, %p148
    %p150 = pneg %p149
    // Predicated region
    $region9: #{tpu_custom_call.1} parent=5 // pred_check
      _
    $region10: #{tpu_custom_call.1} parent=5 // pred_check_branch
      %152 = sbr.rel (%p149) target = $region12
    $region11: #{tpu_custom_call.1} parent=5 // pred_region
      %s153 = ssub.s32 %s10, 1
      // Predicated region
      $region13: #{tpu_custom_call.1} parent=11 // pred_check
        %p154 = pneg %p69
      $region14: #{tpu_custom_call.1} parent=11 // pred_check_branch
        %156 = sbr.rel (%p154) target = $region16
      $region15: #{tpu_custom_call.1} parent=11 // pred_region
        _
      $region16: #{tpu_custom_call.1} parent=11 // pred_fallthru
        _
      // Predicated region
      $region17: #{tpu_custom_call.1} parent=11 // pred_check
        %p157 = pneg %p90
      $region18: #{tpu_custom_call.1} parent=11 // pred_check_branch
        %159 = sbr.rel (%p157) target = $region20
      $region19: #{tpu_custom_call.1} parent=11 // pred_region
        _
      $region20: #{tpu_custom_call.1} parent=11 // pred_fallthru
        _
      // Predicated region
      $region21: #{tpu_custom_call.1} parent=11 // pred_check
        %p160 = pneg %p111
      $region22: #{tpu_custom_call.1} parent=11 // pred_check_branch
        %162 = sbr.rel (%p160) target = $region24
      $region23: #{tpu_custom_call.1} parent=11 // pred_region
        _
      $region24: #{tpu_custom_call.1} parent=11 // pred_fallthru
        _
    $region12: #{tpu_custom_call.1} parent=5 // pred_fallthru
      _
    %p163 = scmp.lt.s32.totalorder %s10, 4
    // Predicated region
    $region25: #{tpu_custom_call.1} parent=5 // pred_check
      %p164 = pneg %p163
    $region26: #{tpu_custom_call.1} parent=5 // pred_check_branch
      %166 = sbr.rel (%p164) target = $region28
    $region27: #{tpu_custom_call.1} parent=5 // pred_region
      // Predicated region
      $region29: #{tpu_custom_call.1} parent=27 // pred_check
        %p167 = pneg %p42
      $region30: #{tpu_custom_call.1} parent=27 // pred_check_branch
        %169 = sbr.rel (%p167) target = $region32
      $region31: #{tpu_custom_call.1} parent=27 // pred_region
        %p170 = scmp.lt.s32.totalorder %s17, 1
        %s171 = scalar_select %p170, %s17, 1
        %s172 = smul.addr %s171, 32
        %s173 = smul.addr %s172, 8
        %s174 = scalar_lea.vmem %s0, %s173
      $region32: #{tpu_custom_call.1} parent=27 // pred_fallthru
        _
    $region28: #{tpu_custom_call.1} parent=5 // pred_fallthru
      _
    %p175 = scmp.le.s32.totalorder 1, %s10
    %p176 = scmp.lt.s32.totalorder %s10, 5
    %p177 = pnand %p175, %p176
    %p178 = pneg %p177
    // Predicated region
    $region33: #{tpu_custom_call.1} parent=5 // pred_check
      _
    $region34: #{tpu_custom_call.1} parent=5 // pred_check_branch
      %180 = sbr.rel (%p177) target = $region36
    $region35: #{tpu_custom_call.1} parent=5 // pred_region
      %s181 = ssub.s32 %s10, 1
      %p182 = scmp.lt.s32.totalorder %s19, 1
      %s183 = scalar_select %p182, %s19, 1
      %s184 = smul.addr %s183, 32
      %s185 = smul.addr %s184, 8
      %s186 = scalar_lea.vmem %s0, %s185
      %p187 = pneg %p48
      %p188 = pneg %p45
      %p189 = pneg %p69
      %p190 = pneg %p66
      %p191 = pneg %p90
      %p192 = pneg %p87
      %p193 = pneg %p111
      %p194 = pneg %p108
      %p195 = pneg %p139
      %p196 = pneg %p136
      %p197 = scmp.lt.s32.totalorder %s19, 1
      %s198 = scalar_select %p197, %s19, 1
      %p199 = scmp.lt.s32.totalorder %s20, 1
      %s200 = scalar_select %p199, %s20, 1
      %s201 = smul.addr %s200, 16
      %s202 = smul.addr %s198, 32
      %s203 = sadd.s32 %s201, %s202
      %s204 = smul.addr %s203, 8
      %s205 = scalar_lea.vmem %s4, %s204
      %p206 = scmp.lt.s32.totalorder %s19, 1
      %s207 = scalar_select %p206, %s19, 1
      %s208 = smul.addr %s207, 32
      %s209 = smul.addr %s208, 8
      %s210 = scalar_lea.vmem %s0, %s209
      %p211 = scmp.lt.s32.totalorder %s19, 1
      %s212 = scalar_select %p211, %s19, 1
      %p213 = scmp.lt.s32.totalorder %s20, 1
      %s214 = scalar_select %p213, %s20, 1
      %s215 = smul.addr %s214, 16
      %s216 = smul.addr %s212, 32
      %s217 = sadd.s32 %s215, %s216
      %s218 = smul.addr %s217, 8
      %s219 = scalar_lea.vmem %s4, %s218
      %s220 = smul.u32 %s20, 8
      %p221 = scmp.eq.s32.totalorder %s20, 0
      // Predicated region
      $region37: #{tpu_custom_call.1} parent=35 // pred_check
        %p222 = pneg %p221
      $region38: #{tpu_custom_call.1} parent=35 // pred_check_branch
        %224 = sbr.rel (%p222) target = $region40
      $region39: #{tpu_custom_call.1} parent=35 // pred_region
        %vm225 = vcmask 31744
        %226 = vst.msk [vmem:[#allocation2] sm:$0xff] %vm225, 0.0
        %227 = vst.msk [vmem:[#allocation2 + $0x20] sm:$0xff] %vm225, 0.0
        %228 = vst.msk [vmem:[#allocation2 + $0x40] sm:$0xff] %vm225, 0.0
        %229 = vst.msk [vmem:[#allocation2 + $0x60] sm:$0xff] %vm225, 0.0
        %230 = vst.msk [vmem:[#allocation2 + $0x80] sm:$0xff] %vm225, 0.0
        %231 = vst.msk [vmem:[#allocation2 + $0xa0] sm:$0xff] %vm225, 0.0
        %232 = vst.msk [vmem:[#allocation2 + $0xc0] sm:$0xff] %vm225, 0.0
        %233 = vst.msk [vmem:[#allocation2 + $0xe0] sm:$0xff] %vm225, 0.0
        %234 = vst.msk [vmem:[#allocation2 + $0x100] sm:$0xff] %vm225, 0.0
        %235 = vst.msk [vmem:[#allocation2 + $0x120] sm:$0xff] %vm225, 0.0
        %vm236 = vcmask 24576
        %237 = vst.msk [vmem:[#allocation2 + $0x18] sm:$0x1] %vm236, 0.0
        %238 = vst.msk [vmem:[#allocation2 + $0x38] sm:$0x1] %vm236, 0.0
        %239 = vst.msk [vmem:[#allocation2 + $0x58] sm:$0x1] %vm236, 0.0
        %240 = vst.msk [vmem:[#allocation2 + $0x78] sm:$0x1] %vm236, 0.0
        %241 = vst.msk [vmem:[#allocation2 + $0x98] sm:$0x1] %vm236, 0.0
        %242 = vst.msk [vmem:[#allocation2 + $0xb8] sm:$0x1] %vm236, 0.0
        %243 = vst.msk [vmem:[#allocation2 + $0xd8] sm:$0x1] %vm236, 0.0
        %244 = vst.msk [vmem:[#allocation2 + $0xf8] sm:$0x1] %vm236, 0.0
        %245 = vst.msk [vmem:[#allocation2 + $0x118] sm:$0x1] %vm236, 0.0
        %246 = vst.msk [vmem:[#allocation2 + $0x138] sm:$0x1] %vm236, 0.0
        %247 = vst.msk [vmem:[#allocation2 + $0x8] sm:$0xff] %vm225, 0.0
        %248 = vst.msk [vmem:[#allocation2 + $0x10] sm:$0xff] %vm225, 0.0
        %s249 = smul.u32 %s220, 16
        %s250 = scalar_lea.vmem %s210, %s249
        %v251 = vld [vmem:[%s250] sm:$0xff]
        %v252 = vld [vmem:[%s250 + $0x8] sm:$0xff]
        %v253 = vld [vmem:[%s250 + $0x10] sm:$0xff]
        %v254 = vld [vmem:[%s250 + $0x18] sm:$0xff]
        %v255 = vld [vmem:[%s250 + $0x20] sm:$0xff]
        %v256 = vld [vmem:[%s250 + $0x28] sm:$0xff]
        %v257 = vld [vmem:[%s250 + $0x30] sm:$0xff]
        %v258 = vld [vmem:[%s250 + $0x38] sm:$0xff]
        %v259 = vld [vmem:[%s250 + $0x40] sm:$0xff]
        %v260 = vld [vmem:[%s250 + $0x48] sm:$0xff]
        %v261 = vld [vmem:[%s250 + $0x50] sm:$0xff]
        %v262 = vld [vmem:[%s250 + $0x58] sm:$0xff]
        %v263 = vld [vmem:[%s250 + $0x60] sm:$0xff]
        %v264 = vld [vmem:[%s250 + $0x68] sm:$0xff]
        %v265 = vld [vmem:[%s250 + $0x70] sm:$0xff]
        %v266 = vld [vmem:[%s250 + $0x78] sm:$0xff]
        %v267 = vld [vmem:[%s250 + $0x80] sm:$0xff]
        %v268 = vld [vmem:[%s250 + $0x88] sm:$0xff]
        %v269 = vld [vmem:[%s1] sm:$0x1]
        %v271 = vperm.slane %v269, 0
        %v273 = vmul.f32 %v251, %v271
        %v274 = vmul.f32 %v252, %v271
        %v275 = vmul.f32 %v253, %v271
        %v276 = vmul.f32 %v254, %v271
        %v277 = vmul.f32 %v255, %v271
        %v278 = vmul.f32 %v256, %v271
        %v279 = vmul.f32 %v257, %v271
        %v280 = vmul.f32 %v258, %v271
        %v281 = vmul.f32 %v259, %v271
        %v282 = vmul.f32 %v260, %v271
        %v283 = vmul.f32 %v261, %v271
        %v284 = vmul.f32 %v262, %v271
        %v285 = vmul.f32 %v263, %v271
        %v286 = vmul.f32 %v264, %v271
        %v287 = vmul.f32 %v265, %v271
        %v288 = vmul.f32 %v266, %v271
        %v289 = vmul.f32 %v267, %v271
        %v290 = vmul.f32 %v268, %v271
        %v291 = vld [vmem:[%s2] sm:$0x1]
        %v293 = vperm.slane %v291, 0
        %v295 = vadd.f32 %v273, %v293
        %v296 = vadd.f32 %v274, %v293
        %v297 = vadd.f32 %v275, %v293
        %v298 = vadd.f32 %v276, %v293
        %v299 = vadd.f32 %v277, %v293
        %v300 = vadd.f32 %v278, %v293
        %v301 = vadd.f32 %v279, %v293
        %v302 = vadd.f32 %v280, %v293
        %v303 = vadd.f32 %v281, %v293
        %v304 = vadd.f32 %v282, %v293
        %v305 = vadd.f32 %v283, %v293
        %v306 = vadd.f32 %v284, %v293
        %v307 = vadd.f32 %v285, %v293
        %v308 = vadd.f32 %v286, %v293
        %v309 = vadd.f32 %v287, %v293
        %v310 = vadd.f32 %v288, %v293
        %v311 = vadd.f32 %v289, %v293
        %v312 = vadd.f32 %v290, %v293
        %v313 = vmax.f32 %v295, 0.0
        %v314 = vmax.f32 %v296, 0.0
        %v315 = vmax.f32 %v297, 0.0
        %v316 = vmax.f32 %v298, 0.0
        %v317 = vmax.f32 %v299, 0.0
        %v318 = vmax.f32 %v300, 0.0
        %v319 = vmax.f32 %v301, 0.0
        %v320 = vmax.f32 %v302, 0.0
        %v321 = vmax.f32 %v303, 0.0
        %v322 = vmax.f32 %v304, 0.0
        %v323 = vmax.f32 %v305, 0.0
        %v324 = vmax.f32 %v306, 0.0
        %v325 = vmax.f32 %v307, 0.0
        %v326 = vmax.f32 %v308, 0.0
        %v327 = vmax.f32 %v309, 0.0
        %v328 = vmax.f32 %v310, 0.0
        %v329 = vmax.f32 %v311, 0.0
        %v330 = vmax.f32 %v312, 0.0
        %s331 = scalar_lea.vmem [#allocation2], 32
        %332 = vst.msk [vmem:[%s331 + $0x8] sm:$0xff] %vm225, %v313
        %333 = vst.msk [vmem:[%s331 + $0x10] sm:$0xff] %vm225, %v314
        %334 = vst.msk [vmem:[%s331 + $0x28] sm:$0xff] %vm225, %v315
        %335 = vst.msk [vmem:[%s331 + $0x30] sm:$0xff] %vm225, %v316
        %336 = vst.msk [vmem:[%s331 + $0x48] sm:$0xff] %vm225, %v317
        %337 = vst.msk [vmem:[%s331 + $0x50] sm:$0xff] %vm225, %v318
        %338 = vst.msk [vmem:[%s331 + $0x68] sm:$0xff] %vm225, %v319
        %339 = vst.msk [vmem:[%s331 + $0x70] sm:$0xff] %vm225, %v320
        %340 = vst.msk [vmem:[%s331 + $0x88] sm:$0xff] %vm225, %v321
        %341 = vst.msk [vmem:[%s331 + $0x90] sm:$0xff] %vm225, %v322
        %342 = vst.msk [vmem:[%s331 + $0xa8] sm:$0xff] %vm225, %v323
        %343 = vst.msk [vmem:[%s331 + $0xb0] sm:$0xff] %vm225, %v324
        %344 = vst.msk [vmem:[%s331 + $0xc8] sm:$0xff] %vm225, %v325
        %345 = vst.msk [vmem:[%s331 + $0xd0] sm:$0xff] %vm225, %v326
        %346 = vst.msk [vmem:[%s331 + $0xe8] sm:$0xff] %vm225, %v327
        %347 = vst.msk [vmem:[%s331 + $0xf0] sm:$0xff] %vm225, %v328
        %348 = vst.msk [vmem:[%s331 + $0x108] sm:$0xff] %vm225, %v329
        %349 = vst.msk [vmem:[%s331 + $0x110] sm:$0xff] %vm225, %v330
      $region40: #{tpu_custom_call.1} parent=35 // pred_fallthru
        _
      %p350 = scmp.eq.s32.totalorder %s20, 1
      // Predicated region
      $region41: #{tpu_custom_call.1} parent=35 // pred_check
        %p351 = pneg %p350
      $region42: #{tpu_custom_call.1} parent=35 // pred_check_branch
        %353 = sbr.rel (%p351) target = $region44
      $region43: #{tpu_custom_call.1} parent=35 // pred_region
        %s354 = ssub.s32 %s220, 1
        %vm355 = vcmask 31744
        %356 = vst.msk [vmem:[#allocation2] sm:$0xff] %vm355, 0.0
        %357 = vst.msk [vmem:[#allocation2 + $0x20] sm:$0xff] %vm355, 0.0
        %358 = vst.msk [vmem:[#allocation2 + $0x40] sm:$0xff] %vm355, 0.0
        %359 = vst.msk [vmem:[#allocation2 + $0x60] sm:$0xff] %vm355, 0.0
        %360 = vst.msk [vmem:[#allocation2 + $0x80] sm:$0xff] %vm355, 0.0
        %361 = vst.msk [vmem:[#allocation2 + $0xa0] sm:$0xff] %vm355, 0.0
        %362 = vst.msk [vmem:[#allocation2 + $0xc0] sm:$0xff] %vm355, 0.0
        %363 = vst.msk [vmem:[#allocation2 + $0xe0] sm:$0xff] %vm355, 0.0
        %364 = vst.msk [vmem:[#allocation2 + $0x100] sm:$0xff] %vm355, 0.0
        %365 = vst.msk [vmem:[#allocation2 + $0x120] sm:$0xff] %vm355, 0.0
        %vm366 = vcmask 24576
        %367 = vst.msk [vmem:[#allocation2 + $0x18] sm:$0x1] %vm366, 0.0
        %368 = vst.msk [vmem:[#allocation2 + $0x38] sm:$0x1] %vm366, 0.0
        %369 = vst.msk [vmem:[#allocation2 + $0x58] sm:$0x1] %vm366, 0.0
        %370 = vst.msk [vmem:[#allocation2 + $0x78] sm:$0x1] %vm366, 0.0
        %371 = vst.msk [vmem:[#allocation2 + $0x98] sm:$0x1] %vm366, 0.0
        %372 = vst.msk [vmem:[#allocation2 + $0xb8] sm:$0x1] %vm366, 0.0
        %373 = vst.msk [vmem:[#allocation2 + $0xd8] sm:$0x1] %vm366, 0.0
        %374 = vst.msk [vmem:[#allocation2 + $0xf8] sm:$0x1] %vm366, 0.0
        %375 = vst.msk [vmem:[#allocation2 + $0x118] sm:$0x1] %vm366, 0.0
        %376 = vst.msk [vmem:[#allocation2 + $0x138] sm:$0x1] %vm366, 0.0
        %s377 = scalar_lea.vmem [#allocation2], 288
        %378 = vst.msk [vmem:[%s377 + $0x8] sm:$0xff] %vm355, 0.0
        %379 = vst.msk [vmem:[%s377 + $0x10] sm:$0xff] %vm355, 0.0
        %s380 = smul.u32 %s354, 16
        %s381 = scalar_lea.vmem %s210, %s380
        %v382 = vld [vmem:[%s381] sm:$0xff]
        %v383 = vld [vmem:[%s381 + $0x8] sm:$0xff]
        %v384 = vld [vmem:[%s381 + $0x10] sm:$0xff]
        %v385 = vld [vmem:[%s381 + $0x18] sm:$0xff]
        %v386 = vld [vmem:[%s381 + $0x20] sm:$0xff]
        %v387 = vld [vmem:[%s381 + $0x28] sm:$0xff]
        %v388 = vld [vmem:[%s381 + $0x30] sm:$0xff]
        %v389 = vld [vmem:[%s381 + $0x38] sm:$0xff]
        %v390 = vld [vmem:[%s381 + $0x40] sm:$0xff]
        %v391 = vld [vmem:[%s381 + $0x48] sm:$0xff]
        %v392 = vld [vmem:[%s381 + $0x50] sm:$0xff]
        %v393 = vld [vmem:[%s381 + $0x58] sm:$0xff]
        %v394 = vld [vmem:[%s381 + $0x60] sm:$0xff]
        %v395 = vld [vmem:[%s381 + $0x68] sm:$0xff]
        %v396 = vld [vmem:[%s381 + $0x70] sm:$0xff]
        %v397 = vld [vmem:[%s381 + $0x78] sm:$0xff]
        %v398 = vld [vmem:[%s381 + $0x80] sm:$0xff]
        %v399 = vld [vmem:[%s381 + $0x88] sm:$0xff]
        %v400 = vld [vmem:[%s1] sm:$0x1]
        %v402 = vperm.slane %v400, 0
        %v404 = vmul.f32 %v382, %v402
        %v405 = vmul.f32 %v383, %v402
        %v406 = vmul.f32 %v384, %v402
        %v407 = vmul.f32 %v385, %v402
        %v408 = vmul.f32 %v386, %v402
        %v409 = vmul.f32 %v387, %v402
        %v410 = vmul.f32 %v388, %v402
        %v411 = vmul.f32 %v389, %v402
        %v412 = vmul.f32 %v390, %v402
        %v413 = vmul.f32 %v391, %v402
        %v414 = vmul.f32 %v392, %v402
        %v415 = vmul.f32 %v393, %v402
        %v416 = vmul.f32 %v394, %v402
        %v417 = vmul.f32 %v395, %v402
        %v418 = vmul.f32 %v396, %v402
        %v419 = vmul.f32 %v397, %v402
        %v420 = vmul.f32 %v398, %v402
        %v421 = vmul.f32 %v399, %v402
        %v422 = vld [vmem:[%s2] sm:$0x1]
        %v424 = vperm.slane %v422, 0
        %v426 = vadd.f32 %v404, %v424
        %v427 = vadd.f32 %v405, %v424
        %v428 = vadd.f32 %v406, %v424
        %v429 = vadd.f32 %v407, %v424
        %v430 = vadd.f32 %v408, %v424
        %v431 = vadd.f32 %v409, %v424
        %v432 = vadd.f32 %v410, %v424
        %v433 = vadd.f32 %v411, %v424
        %v434 = vadd.f32 %v412, %v424
        %v435 = vadd.f32 %v413, %v424
        %v436 = vadd.f32 %v414, %v424
        %v437 = vadd.f32 %v415, %v424
        %v438 = vadd.f32 %v416, %v424
        %v439 = vadd.f32 %v417, %v424
        %v440 = vadd.f32 %v418, %v424
        %v441 = vadd.f32 %v419, %v424
        %v442 = vadd.f32 %v420, %v424
        %v443 = vadd.f32 %v421, %v424
        %v444 = vmax.f32 %v426, 0.0
        %v445 = vmax.f32 %v427, 0.0
        %v446 = vmax.f32 %v428, 0.0
        %v447 = vmax.f32 %v429, 0.0
        %v448 = vmax.f32 %v430, 0.0
        %v449 = vmax.f32 %v431, 0.0
        %v450 = vmax.f32 %v432, 0.0
        %v451 = vmax.f32 %v433, 0.0
        %v452 = vmax.f32 %v434, 0.0
        %v453 = vmax.f32 %v435, 0.0
        %v454 = vmax.f32 %v436, 0.0
        %v455 = vmax.f32 %v437, 0.0
        %v456 = vmax.f32 %v438, 0.0
        %v457 = vmax.f32 %v439, 0.0
        %v458 = vmax.f32 %v440, 0.0
        %v459 = vmax.f32 %v441, 0.0
        %v460 = vmax.f32 %v442, 0.0
        %v461 = vmax.f32 %v443, 0.0
        %462 = vst.msk [vmem:[#allocation2 + $0x8] sm:$0xff] %vm355, %v444
        %463 = vst.msk [vmem:[#allocation2 + $0x10] sm:$0xff] %vm355, %v445
        %464 = vst.msk [vmem:[#allocation2 + $0x28] sm:$0xff] %vm355, %v446
        %465 = vst.msk [vmem:[#allocation2 + $0x30] sm:$0xff] %vm355, %v447
        %466 = vst.msk [vmem:[#allocation2 + $0x48] sm:$0xff] %vm355, %v448
        %467 = vst.msk [vmem:[#allocation2 + $0x50] sm:$0xff] %vm355, %v449
        %468 = vst.msk [vmem:[#allocation2 + $0x68] sm:$0xff] %vm355, %v450
        %469 = vst.msk [vmem:[#allocation2 + $0x70] sm:$0xff] %vm355, %v451
        %470 = vst.msk [vmem:[#allocation2 + $0x88] sm:$0xff] %vm355, %v452
        %471 = vst.msk [vmem:[#allocation2 + $0x90] sm:$0xff] %vm355, %v453
        %472 = vst.msk [vmem:[#allocation2 + $0xa8] sm:$0xff] %vm355, %v454
        %473 = vst.msk [vmem:[#allocation2 + $0xb0] sm:$0xff] %vm355, %v455
        %474 = vst.msk [vmem:[#allocation2 + $0xc8] sm:$0xff] %vm355, %v456
        %475 = vst.msk [vmem:[#allocation2 + $0xd0] sm:$0xff] %vm355, %v457
        %476 = vst.msk [vmem:[#allocation2 + $0xe8] sm:$0xff] %vm355, %v458
        %477 = vst.msk [vmem:[#allocation2 + $0xf0] sm:$0xff] %vm355, %v459
        %478 = vst.msk [vmem:[#allocation2 + $0x108] sm:$0xff] %vm355, %v460
        %479 = vst.msk [vmem:[#allocation2 + $0x110] sm:$0xff] %vm355, %v461
      $region44: #{tpu_custom_call.1} parent=35 // pred_fallthru
        _
      %v480 = vld [vmem:[#allocation2] sm:$0xff]
      %v481 = vld [vmem:[#allocation2 + $0x8] sm:$0xff]
      %v482 = vld [vmem:[#allocation2 + $0x10] sm:$0xff]
      %v483 = vld [vmem:[#allocation2 + $0x18] sm:$0x1]
      %v484 = vld [vmem:[#allocation2 + $0x20] sm:$0xff]
      %v485 = vld [vmem:[#allocation2 + $0x28] sm:$0xff]
      %v486 = vld [vmem:[#allocation2 + $0x30] sm:$0xff]
      %v487 = vld [vmem:[#allocation2 + $0x38] sm:$0x1]
      %v488 = vld [vmem:[#allocation2 + $0x40] sm:$0xff]
      %v489 = vld [vmem:[#allocation2 + $0x48] sm:$0xff]
      %v490 = vld [vmem:[#allocation2 + $0x50] sm:$0xff]
      %v491 = vld [vmem:[#allocation2 + $0x58] sm:$0x1]
      %v492 = vld [vmem:[#allocation2 + $0x60] sm:$0xff]
      %v493 = vld [vmem:[#allocation2 + $0x68] sm:$0xff]
      %v494 = vld [vmem:[#allocation2 + $0x70] sm:$0xff]
      %v495 = vld [vmem:[#allocation2 + $0x78] sm:$0x1]
      %v496 = vld [vmem:[#allocation2 + $0x80] sm:$0xff]
      %v497 = vld [vmem:[#allocation2 + $0x88] sm:$0xff]
      %v498 = vld [vmem:[#allocation2 + $0x90] sm:$0xff]
      %v499 = vld [vmem:[#allocation2 + $0x98] sm:$0x1]
      %v500 = vld [vmem:[#allocation2 + $0xa0] sm:$0xff]
      %v501 = vld [vmem:[#allocation2 + $0xa8] sm:$0xff]
      %v502 = vld [vmem:[#allocation2 + $0xb0] sm:$0xff]
      %v503 = vld [vmem:[#allocation2 + $0xb8] sm:$0x1]
      %v504 = vld [vmem:[#allocation2 + $0xc0] sm:$0xff]
      %v505 = vld [vmem:[#allocation2 + $0xc8] sm:$0xff]
      %v506 = vld [vmem:[#allocation2 + $0xd0] sm:$0xff]
      %v507 = vld [vmem:[#allocation2 + $0xd8] sm:$0x1]
      %v508 = vld [vmem:[#allocation2 + $0xe0] sm:$0xff]
      %v509 = vld [vmem:[#allocation2 + $0xe8] sm:$0xff]
      %v510 = vld [vmem:[#allocation2 + $0xf0] sm:$0xff]
      %v511 = vld [vmem:[#allocation2 + $0xf8] sm:$0x1]
      %v512 = vld [vmem:[#allocation2 + $0x100] sm:$0xff]
      %v513 = vld [vmem:[#allocation2 + $0x108] sm:$0xff]
      %v514 = vld [vmem:[#allocation2 + $0x110] sm:$0xff]
      %v515 = vld [vmem:[#allocation2 + $0x118] sm:$0x1]
      %v516 = vld [vmem:[#allocation2 + $0x120] sm:$0xff]
      %v517 = vld [vmem:[#allocation2 + $0x128] sm:$0xff]
      %v518 = vld [vmem:[#allocation2 + $0x130] sm:$0xff]
      %v519 = vld [vmem:[#allocation2 + $0x138] sm:$0x1]
      %vm536 = vcmask 1046528
      %v537 = vrot.slane %v481, 1
      %v538 = vrot.slane %v482, 1
      %v539 = vsel %vm536, %v537, %v538
      %v540 = vrot.slane %v485, 1
      %v541 = vrot.slane %v486, 1
      %v542 = vsel %vm536, %v540, %v541
      %v543 = vrot.slane %v489, 1
      %v544 = vrot.slane %v490, 1
      %v545 = vsel %vm536, %v543, %v544
      %v546 = vrot.slane %v493, 1
      %v547 = vrot.slane %v494, 1
      %v548 = vsel %vm536, %v546, %v547
      %v549 = vrot.slane %v497, 1
      %v550 = vrot.slane %v498, 1
      %v551 = vsel %vm536, %v549, %v550
      %v552 = vrot.slane %v501, 1
      %v553 = vrot.slane %v502, 1
      %v554 = vsel %vm536, %v552, %v553
      %v555 = vrot.slane %v505, 1
      %v556 = vrot.slane %v506, 1
      %v557 = vsel %vm536, %v555, %v556
      %v558 = vrot.slane %v509, 1
      %v559 = vrot.slane %v510, 1
      %v560 = vsel %vm536, %v558, %v559
      %561 = vrot.lane.b32.xlu0 %v537, 4
      %v562 = vpop.permute.xlu0 %561
      %563 = vrot.lane.b32.xlu0 %v539, 4
      %v564 = vpop.permute.xlu0 %563
      %565 = vrot.lane.b32.xlu0 %v538, 4
      %v566 = vpop.permute.xlu0 %565
      %567 = vrot.lane.b32.xlu0 %v540, 4
      %v568 = vpop.permute.xlu0 %567
      %569 = vrot.lane.b32.xlu0 %v542, 4
      %v570 = vpop.permute.xlu0 %569
      %571 = vrot.lane.b32.xlu0 %v541, 4
      %v572 = vpop.permute.xlu0 %571
      %573 = vrot.lane.b32.xlu0 %v543, 4
      %v574 = vpop.permute.xlu0 %573
      %575 = vrot.lane.b32.xlu0 %v545, 4
      %v576 = vpop.permute.xlu0 %575
      %577 = vrot.lane.b32.xlu0 %v544, 4
      %v578 = vpop.permute.xlu0 %577
      %579 = vrot.lane.b32.xlu0 %v546, 4
      %v580 = vpop.permute.xlu0 %579
      %581 = vrot.lane.b32.xlu0 %v548, 4
      %v582 = vpop.permute.xlu0 %581
      %583 = vrot.lane.b32.xlu0 %v547, 4
      %v584 = vpop.permute.xlu0 %583
      %585 = vrot.lane.b32.xlu0 %v549, 4
      %v586 = vpop.permute.xlu0 %585
      %587 = vrot.lane.b32.xlu0 %v551, 4
      %v588 = vpop.permute.xlu0 %587
      %589 = vrot.lane.b32.xlu0 %v550, 4
      %v590 = vpop.permute.xlu0 %589
      %591 = vrot.lane.b32.xlu0 %v552, 4
      %v592 = vpop.permute.xlu0 %591
      %593 = vrot.lane.b32.xlu0 %v554, 4
      %v594 = vpop.permute.xlu0 %593
      %595 = vrot.lane.b32.xlu0 %v553, 4
      %v596 = vpop.permute.xlu0 %595
      %597 = vrot.lane.b32.xlu0 %v555, 4
      %v598 = vpop.permute.xlu0 %597
      %599 = vrot.lane.b32.xlu0 %v557, 4
      %v600 = vpop.permute.xlu0 %599
      %601 = vrot.lane.b32.xlu0 %v556, 4
      %v602 = vpop.permute.xlu0 %601
      %603 = vrot.lane.b32.xlu0 %v558, 4
      %v604 = vpop.permute.xlu0 %603
      %605 = vrot.lane.b32.xlu0 %v560, 4
      %v606 = vpop.permute.xlu0 %605
      %607 = vrot.lane.b32.xlu0 %v559, 4
      %v608 = vpop.permute.xlu0 %607
      %vm641 = vcmask 1045504
      %v642 = vrot.slane %v481, 2
      %v643 = vrot.slane %v482, 2
      %v644 = vsel %vm641, %v642, %v643
      %v645 = vrot.slane %v483, 2
      %v646 = vsel %vm641, %v643, %v645
      %v647 = vrot.slane %v485, 2
      %v648 = vrot.slane %v486, 2
      %v649 = vsel %vm641, %v647, %v648
      %v650 = vrot.slane %v487, 2
      %v651 = vsel %vm641, %v648, %v650
      %v652 = vrot.slane %v489, 2
      %v653 = vrot.slane %v490, 2
      %v654 = vsel %vm641, %v652, %v653
      %v655 = vrot.slane %v491, 2
      %v656 = vsel %vm641, %v653, %v655
      %v657 = vrot.slane %v493, 2
      %v658 = vrot.slane %v494, 2
      %v659 = vsel %vm641, %v657, %v658
      %v660 = vrot.slane %v495, 2
      %v661 = vsel %vm641, %v658, %v660
      %v662 = vrot.slane %v497, 2
      %v663 = vrot.slane %v498, 2
      %v664 = vsel %vm641, %v662, %v663
      %v665 = vrot.slane %v499, 2
      %v666 = vsel %vm641, %v663, %v665
      %v667 = vrot.slane %v501, 2
      %v668 = vrot.slane %v502, 2
      %v669 = vsel %vm641, %v667, %v668
      %v670 = vrot.slane %v503, 2
      %v671 = vsel %vm641, %v668, %v670
      %v672 = vrot.slane %v505, 2
      %v673 = vrot.slane %v506, 2
      %v674 = vsel %vm641, %v672, %v673
      %v675 = vrot.slane %v507, 2
      %v676 = vsel %vm641, %v673, %v675
      %v677 = vrot.slane %v509, 2
      %v678 = vrot.slane %v510, 2
      %v679 = vsel %vm641, %v677, %v678
      %v680 = vrot.slane %v511, 2
      %v681 = vsel %vm641, %v678, %v680
      %682 = vrot.lane.b32.xlu0 %v642, 8
      %v683 = vpop.permute.xlu0 %682
      %684 = vrot.lane.b32.xlu0 %v644, 8
      %v685 = vpop.permute.xlu0 %684
      %686 = vrot.lane.b32.xlu0 %v646, 8
      %v687 = vpop.permute.xlu0 %686
      %688 = vrot.lane.b32.xlu0 %v647, 8
      %v689 = vpop.permute.xlu0 %688
      %690 = vrot.lane.b32.xlu0 %v649, 8
      %v691 = vpop.permute.xlu0 %690
      %692 = vrot.lane.b32.xlu0 %v651, 8
      %v693 = vpop.permute.xlu0 %692
      %694 = vrot.lane.b32.xlu0 %v652, 8
      %v695 = vpop.permute.xlu0 %694
      %696 = vrot.lane.b32.xlu0 %v654, 8
      %v697 = vpop.permute.xlu0 %696
      %698 = vrot.lane.b32.xlu0 %v656, 8
      %v699 = vpop.permute.xlu0 %698
      %700 = vrot.lane.b32.xlu0 %v657, 8
      %v701 = vpop.permute.xlu0 %700
      %702 = vrot.lane.b32.xlu0 %v659, 8
      %v703 = vpop.permute.xlu0 %702
      %704 = vrot.lane.b32.xlu0 %v661, 8
      %v705 = vpop.permute.xlu0 %704
      %706 = vrot.lane.b32.xlu0 %v662, 8
      %v707 = vpop.permute.xlu0 %706
      %708 = vrot.lane.b32.xlu0 %v664, 8
      %v709 = vpop.permute.xlu0 %708
      %710 = vrot.lane.b32.xlu0 %v666, 8
      %v711 = vpop.permute.xlu0 %710
      %712 = vrot.lane.b32.xlu0 %v667, 8
      %v713 = vpop.permute.xlu0 %712
      %714 = vrot.lane.b32.xlu0 %v669, 8
      %v715 = vpop.permute.xlu0 %714
      %716 = vrot.lane.b32.xlu0 %v671, 8
      %v717 = vpop.permute.xlu0 %716
      %718 = vrot.lane.b32.xlu0 %v672, 8
      %v719 = vpop.permute.xlu0 %718
      %720 = vrot.lane.b32.xlu0 %v674, 8
      %v721 = vpop.permute.xlu0 %720
      %722 = vrot.lane.b32.xlu0 %v676, 8
      %v723 = vpop.permute.xlu0 %722
      %724 = vrot.lane.b32.xlu0 %v677, 8
      %v725 = vpop.permute.xlu0 %724
      %726 = vrot.lane.b32.xlu0 %v679, 8
      %v727 = vpop.permute.xlu0 %726
      %728 = vrot.lane.b32.xlu0 %v681, 8
      %v729 = vpop.permute.xlu0 %728
      %764 = vrot.lane.b32.xlu0 %v484, 12
      %v765 = vpop.permute.xlu0 %764
      %766 = vrot.lane.b32.xlu0 %v485, 12
      %v767 = vpop.permute.xlu0 %766
      %768 = vrot.lane.b32.xlu0 %v486, 12
      %v769 = vpop.permute.xlu0 %768
      %770 = vrot.lane.b32.xlu0 %v488, 12
      %v771 = vpop.permute.xlu0 %770
      %772 = vrot.lane.b32.xlu0 %v489, 12
      %v773 = vpop.permute.xlu0 %772
      %774 = vrot.lane.b32.xlu0 %v490, 12
      %v775 = vpop.permute.xlu0 %774
      %776 = vrot.lane.b32.xlu0 %v492, 12
      %v777 = vpop.permute.xlu0 %776
      %778 = vrot.lane.b32.xlu0 %v493, 12
      %v779 = vpop.permute.xlu0 %778
      %780 = vrot.lane.b32.xlu0 %v494, 12
      %v781 = vpop.permute.xlu0 %780
      %782 = vrot.lane.b32.xlu0 %v496, 12
      %v783 = vpop.permute.xlu0 %782
      %784 = vrot.lane.b32.xlu0 %v497, 12
      %v785 = vpop.permute.xlu0 %784
      %786 = vrot.lane.b32.xlu0 %v498, 12
      %v787 = vpop.permute.xlu0 %786
      %788 = vrot.lane.b32.xlu0 %v500, 12
      %v789 = vpop.permute.xlu0 %788
      %790 = vrot.lane.b32.xlu0 %v501, 12
      %v791 = vpop.permute.xlu0 %790
      %792 = vrot.lane.b32.xlu0 %v502, 12
      %v793 = vpop.permute.xlu0 %792
      %794 = vrot.lane.b32.xlu0 %v504, 12
      %v795 = vpop.permute.xlu0 %794
      %796 = vrot.lane.b32.xlu0 %v505, 12
      %v797 = vpop.permute.xlu0 %796
      %798 = vrot.lane.b32.xlu0 %v506, 12
      %v799 = vpop.permute.xlu0 %798
      %800 = vrot.lane.b32.xlu0 %v508, 12
      %v801 = vpop.permute.xlu0 %800
      %802 = vrot.lane.b32.xlu0 %v509, 12
      %v803 = vpop.permute.xlu0 %802
      %804 = vrot.lane.b32.xlu0 %v510, 12
      %v805 = vpop.permute.xlu0 %804
      %806 = vrot.lane.b32.xlu0 %v512, 12
      %v807 = vpop.permute.xlu0 %806
      %808 = vrot.lane.b32.xlu0 %v513, 12
      %v809 = vpop.permute.xlu0 %808
      %810 = vrot.lane.b32.xlu0 %v514, 12
      %v811 = vpop.permute.xlu0 %810
      %v836 = vrot.slane %v513, 1
      %v837 = vrot.slane %v514, 1
      %v838 = vsel %vm536, %v836, %v837
      %839 = vrot.lane.b32.xlu0 %v540, 16
      %v840 = vpop.permute.xlu0 %839
      %841 = vrot.lane.b32.xlu0 %v542, 16
      %v842 = vpop.permute.xlu0 %841
      %843 = vrot.lane.b32.xlu0 %v541, 16
      %v844 = vpop.permute.xlu0 %843
      %845 = vrot.lane.b32.xlu0 %v543, 16
      %v846 = vpop.permute.xlu0 %845
      %847 = vrot.lane.b32.xlu0 %v545, 16
      %v848 = vpop.permute.xlu0 %847
      %849 = vrot.lane.b32.xlu0 %v544, 16
      %v850 = vpop.permute.xlu0 %849
      %851 = vrot.lane.b32.xlu0 %v546, 16
      %v852 = vpop.permute.xlu0 %851
      %853 = vrot.lane.b32.xlu0 %v548, 16
      %v854 = vpop.permute.xlu0 %853
      %855 = vrot.lane.b32.xlu0 %v547, 16
      %v856 = vpop.permute.xlu0 %855
      %857 = vrot.lane.b32.xlu0 %v549, 16
      %v858 = vpop.permute.xlu0 %857
      %859 = vrot.lane.b32.xlu0 %v551, 16
      %v860 = vpop.permute.xlu0 %859
      %861 = vrot.lane.b32.xlu0 %v550, 16
      %v862 = vpop.permute.xlu0 %861
      %863 = vrot.lane.b32.xlu0 %v552, 16
      %v864 = vpop.permute.xlu0 %863
      %865 = vrot.lane.b32.xlu0 %v554, 16
      %v866 = vpop.permute.xlu0 %865
      %867 = vrot.lane.b32.xlu0 %v553, 16
      %v868 = vpop.permute.xlu0 %867
      %869 = vrot.lane.b32.xlu0 %v555, 16
      %v870 = vpop.permute.xlu0 %869
      %871 = vrot.lane.b32.xlu0 %v557, 16
      %v872 = vpop.permute.xlu0 %871
      %873 = vrot.lane.b32.xlu0 %v556, 16
      %v874 = vpop.permute.xlu0 %873
      %875 = vrot.lane.b32.xlu0 %v558, 16
      %v876 = vpop.permute.xlu0 %875
      %877 = vrot.lane.b32.xlu0 %v560, 16
      %v878 = vpop.permute.xlu0 %877
      %879 = vrot.lane.b32.xlu0 %v559, 16
      %v880 = vpop.permute.xlu0 %879
      %881 = vrot.lane.b32.xlu0 %v836, 16
      %v882 = vpop.permute.xlu0 %881
      %883 = vrot.lane.b32.xlu0 %v838, 16
      %v884 = vpop.permute.xlu0 %883
      %885 = vrot.lane.b32.xlu0 %v837, 16
      %v886 = vpop.permute.xlu0 %885
      %v912 = vrot.slane %v513, 2
      %v913 = vrot.slane %v514, 2
      %v914 = vsel %vm641, %v912, %v913
      %v915 = vrot.slane %v515, 2
      %v916 = vsel %vm641, %v913, %v915
      %917 = vrot.lane.b32.xlu0 %v647, 20
      %v918 = vpop.permute.xlu0 %917
      %919 = vrot.lane.b32.xlu0 %v649, 20
      %v920 = vpop.permute.xlu0 %919
      %921 = vrot.lane.b32.xlu0 %v651, 20
      %v922 = vpop.permute.xlu0 %921
      %923 = vrot.lane.b32.xlu0 %v652, 20
      %v924 = vpop.permute.xlu0 %923
      %925 = vrot.lane.b32.xlu0 %v654, 20
      %v926 = vpop.permute.xlu0 %925
      %927 = vrot.lane.b32.xlu0 %v656, 20
      %v928 = vpop.permute.xlu0 %927
      %929 = vrot.lane.b32.xlu0 %v657, 20
      %v930 = vpop.permute.xlu0 %929
      %931 = vrot.lane.b32.xlu0 %v659, 20
      %v932 = vpop.permute.xlu0 %931
      %933 = vrot.lane.b32.xlu0 %v661, 20
      %v934 = vpop.permute.xlu0 %933
      %935 = vrot.lane.b32.xlu0 %v662, 20
      %v936 = vpop.permute.xlu0 %935
      %937 = vrot.lane.b32.xlu0 %v664, 20
      %v938 = vpop.permute.xlu0 %937
      %939 = vrot.lane.b32.xlu0 %v666, 20
      %v940 = vpop.permute.xlu0 %939
      %941 = vrot.lane.b32.xlu0 %v667, 20
      %v942 = vpop.permute.xlu0 %941
      %943 = vrot.lane.b32.xlu0 %v669, 20
      %v944 = vpop.permute.xlu0 %943
      %945 = vrot.lane.b32.xlu0 %v671, 20
      %v946 = vpop.permute.xlu0 %945
      %947 = vrot.lane.b32.xlu0 %v672, 20
      %v948 = vpop.permute.xlu0 %947
      %949 = vrot.lane.b32.xlu0 %v674, 20
      %v950 = vpop.permute.xlu0 %949
      %951 = vrot.lane.b32.xlu0 %v676, 20
      %v952 = vpop.permute.xlu0 %951
      %953 = vrot.lane.b32.xlu0 %v677, 20
      %v954 = vpop.permute.xlu0 %953
      %955 = vrot.lane.b32.xlu0 %v679, 20
      %v956 = vpop.permute.xlu0 %955
      %957 = vrot.lane.b32.xlu0 %v681, 20
      %v958 = vpop.permute.xlu0 %957
      %959 = vrot.lane.b32.xlu0 %v912, 20
      %v960 = vpop.permute.xlu0 %959
      %961 = vrot.lane.b32.xlu0 %v914, 20
      %v962 = vpop.permute.xlu0 %961
      %963 = vrot.lane.b32.xlu0 %v916, 20
      %v964 = vpop.permute.xlu0 %963
      %992 = vrot.lane.b32.xlu0 %v488, 24
      %v993 = vpop.permute.xlu0 %992
      %994 = vrot.lane.b32.xlu0 %v489, 24
      %v995 = vpop.permute.xlu0 %994
      %996 = vrot.lane.b32.xlu0 %v490, 24
      %v997 = vpop.permute.xlu0 %996
      %998 = vrot.lane.b32.xlu0 %v492, 24
      %v999 = vpop.permute.xlu0 %998
      %1000 = vrot.lane.b32.xlu0 %v493, 24
      %v1001 = vpop.permute.xlu0 %1000
      %1002 = vrot.lane.b32.xlu0 %v494, 24
      %v1003 = vpop.permute.xlu0 %1002
      %1004 = vrot.lane.b32.xlu0 %v496, 24
      %v1005 = vpop.permute.xlu0 %1004
      %1006 = vrot.lane.b32.xlu0 %v497, 24
      %v1007 = vpop.permute.xlu0 %1006
      %1008 = vrot.lane.b32.xlu0 %v498, 24
      %v1009 = vpop.permute.xlu0 %1008
      %1010 = vrot.lane.b32.xlu0 %v500, 24
      %v1011 = vpop.permute.xlu0 %1010
      %1012 = vrot.lane.b32.xlu0 %v501, 24
      %v1013 = vpop.permute.xlu0 %1012
      %1014 = vrot.lane.b32.xlu0 %v502, 24
      %v1015 = vpop.permute.xlu0 %1014
      %1016 = vrot.lane.b32.xlu0 %v504, 24
      %v1017 = vpop.permute.xlu0 %1016
      %1018 = vrot.lane.b32.xlu0 %v505, 24
      %v1019 = vpop.permute.xlu0 %1018
      %1020 = vrot.lane.b32.xlu0 %v506, 24
      %v1021 = vpop.permute.xlu0 %1020
      %1022 = vrot.lane.b32.xlu0 %v508, 24
      %v1023 = vpop.permute.xlu0 %1022
      %1024 = vrot.lane.b32.xlu0 %v509, 24
      %v1025 = vpop.permute.xlu0 %1024
      %1026 = vrot.lane.b32.xlu0 %v510, 24
      %v1027 = vpop.permute.xlu0 %1026
      %1028 = vrot.lane.b32.xlu0 %v512, 24
      %v1029 = vpop.permute.xlu0 %1028
      %1030 = vrot.lane.b32.xlu0 %v513, 24
      %v1031 = vpop.permute.xlu0 %1030
      %1032 = vrot.lane.b32.xlu0 %v514, 24
      %v1033 = vpop.permute.xlu0 %1032
      %1034 = vrot.lane.b32.xlu0 %v516, 24
      %v1035 = vpop.permute.xlu0 %1034
      %1036 = vrot.lane.b32.xlu0 %v517, 24
      %v1037 = vpop.permute.xlu0 %1036
      %1038 = vrot.lane.b32.xlu0 %v518, 24
      %v1039 = vpop.permute.xlu0 %1038
      %v1064 = vrot.slane %v517, 1
      %v1065 = vrot.slane %v518, 1
      %v1066 = vsel %vm536, %v1064, %v1065
      %1067 = vrot.lane.b32.xlu0 %v543, 28
      %v1068 = vpop.permute.xlu0 %1067
      %1069 = vrot.lane.b32.xlu0 %v545, 28
      %v1070 = vpop.permute.xlu0 %1069
      %1071 = vrot.lane.b32.xlu0 %v544, 28
      %v1072 = vpop.permute.xlu0 %1071
      %1073 = vrot.lane.b32.xlu0 %v546, 28
      %v1074 = vpop.permute.xlu0 %1073
      %1075 = vrot.lane.b32.xlu0 %v548, 28
      %v1076 = vpop.permute.xlu0 %1075
      %1077 = vrot.lane.b32.xlu0 %v547, 28
      %v1078 = vpop.permute.xlu0 %1077
      %1079 = vrot.lane.b32.xlu0 %v549, 28
      %v1080 = vpop.permute.xlu0 %1079
      %1081 = vrot.lane.b32.xlu0 %v551, 28
      %v1082 = vpop.permute.xlu0 %1081
      %1083 = vrot.lane.b32.xlu0 %v550, 28
      %v1084 = vpop.permute.xlu0 %1083
      %1085 = vrot.lane.b32.xlu0 %v552, 28
      %v1086 = vpop.permute.xlu0 %1085
      %1087 = vrot.lane.b32.xlu0 %v554, 28
      %v1088 = vpop.permute.xlu0 %1087
      %1089 = vrot.lane.b32.xlu0 %v553, 28
      %v1090 = vpop.permute.xlu0 %1089
      %1091 = vrot.lane.b32.xlu0 %v555, 28
      %v1092 = vpop.permute.xlu0 %1091
      %1093 = vrot.lane.b32.xlu0 %v557, 28
      %v1094 = vpop.permute.xlu0 %1093
      %1095 = vrot.lane.b32.xlu0 %v556, 28
      %v1096 = vpop.permute.xlu0 %1095
      %1097 = vrot.lane.b32.xlu0 %v558, 28
      %v1098 = vpop.permute.xlu0 %1097
      %1099 = vrot.lane.b32.xlu0 %v560, 28
      %v1100 = vpop.permute.xlu0 %1099
      %1101 = vrot.lane.b32.xlu0 %v559, 28
      %v1102 = vpop.permute.xlu0 %1101
      %1103 = vrot.lane.b32.xlu0 %v836, 28
      %v1104 = vpop.permute.xlu0 %1103
      %1105 = vrot.lane.b32.xlu0 %v838, 28
      %v1106 = vpop.permute.xlu0 %1105
      %1107 = vrot.lane.b32.xlu0 %v837, 28
      %v1108 = vpop.permute.xlu0 %1107
      %1109 = vrot.lane.b32.xlu0 %v1064, 28
      %v1110 = vpop.permute.xlu0 %1109
      %1111 = vrot.lane.b32.xlu0 %v1066, 28
      %v1112 = vpop.permute.xlu0 %1111
      %1113 = vrot.lane.b32.xlu0 %v1065, 28
      %v1114 = vpop.permute.xlu0 %1113
      %v1140 = vrot.slane %v517, 2
      %v1141 = vrot.slane %v518, 2
      %v1142 = vsel %vm641, %v1140, %v1141
      %v1143 = vrot.slane %v519, 2
      %v1144 = vsel %vm641, %v1141, %v1143
      %1145 = vrot.lane.b32.xlu0 %v652, 32
      %v1146 = vpop.permute.xlu0 %1145
      %1147 = vrot.lane.b32.xlu0 %v654, 32
      %v1148 = vpop.permute.xlu0 %1147
      %1149 = vrot.lane.b32.xlu0 %v656, 32
      %v1150 = vpop.permute.xlu0 %1149
      %1151 = vrot.lane.b32.xlu0 %v657, 32
      %v1152 = vpop.permute.xlu0 %1151
      %1153 = vrot.lane.b32.xlu0 %v659, 32
      %v1154 = vpop.permute.xlu0 %1153
      %1155 = vrot.lane.b32.xlu0 %v661, 32
      %v1156 = vpop.permute.xlu0 %1155
      %1157 = vrot.lane.b32.xlu0 %v662, 32
      %v1158 = vpop.permute.xlu0 %1157
      %1159 = vrot.lane.b32.xlu0 %v664, 32
      %v1160 = vpop.permute.xlu0 %1159
      %1161 = vrot.lane.b32.xlu0 %v666, 32
      %v1162 = vpop.permute.xlu0 %1161
      %1163 = vrot.lane.b32.xlu0 %v667, 32
      %v1164 = vpop.permute.xlu0 %1163
      %1165 = vrot.lane.b32.xlu0 %v669, 32
      %v1166 = vpop.permute.xlu0 %1165
      %1167 = vrot.lane.b32.xlu0 %v671, 32
      %v1168 = vpop.permute.xlu0 %1167
      %1169 = vrot.lane.b32.xlu0 %v672, 32
      %v1170 = vpop.permute.xlu0 %1169
      %1171 = vrot.lane.b32.xlu0 %v674, 32
      %v1172 = vpop.permute.xlu0 %1171
      %1173 = vrot.lane.b32.xlu0 %v676, 32
      %v1174 = vpop.permute.xlu0 %1173
      %1175 = vrot.lane.b32.xlu0 %v677, 32
      %v1176 = vpop.permute.xlu0 %1175
      %1177 = vrot.lane.b32.xlu0 %v679, 32
      %v1178 = vpop.permute.xlu0 %1177
      %1179 = vrot.lane.b32.xlu0 %v681, 32
      %v1180 = vpop.permute.xlu0 %1179
      %1181 = vrot.lane.b32.xlu0 %v912, 32
      %v1182 = vpop.permute.xlu0 %1181
      %1183 = vrot.lane.b32.xlu0 %v914, 32
      %v1184 = vpop.permute.xlu0 %1183
      %1185 = vrot.lane.b32.xlu0 %v916, 32
      %v1186 = vpop.permute.xlu0 %1185
      %1187 = vrot.lane.b32.xlu0 %v1140, 32
      %v1188 = vpop.permute.xlu0 %1187
      %1189 = vrot.lane.b32.xlu0 %v1142, 32
      %v1190 = vpop.permute.xlu0 %1189
      %1191 = vrot.lane.b32.xlu0 %v1144, 32
      %v1192 = vpop.permute.xlu0 %1191
      %vm1217 = vcmask 31744
      %v1218 = vsel %vm1217, %v480, %v562
      %v1219 = vsel %vm1217, %v481, %v564
      %v1220 = vsel %vm1217, %v482, %v566
      %v1221 = vsel %vm1217, %v484, %v568
      %v1222 = vsel %vm1217, %v485, %v570
      %v1223 = vsel %vm1217, %v486, %v572
      %v1224 = vsel %vm1217, %v488, %v574
      %v1225 = vsel %vm1217, %v489, %v576
      %v1226 = vsel %vm1217, %v490, %v578
      %v1227 = vsel %vm1217, %v492, %v580
      %v1228 = vsel %vm1217, %v493, %v582
      %v1229 = vsel %vm1217, %v494, %v584
      %v1230 = vsel %vm1217, %v496, %v586
      %v1231 = vsel %vm1217, %v497, %v588
      %v1232 = vsel %vm1217, %v498, %v590
      %v1233 = vsel %vm1217, %v500, %v592
      %v1234 = vsel %vm1217, %v501, %v594
      %v1235 = vsel %vm1217, %v502, %v596
      %v1236 = vsel %vm1217, %v504, %v598
      %v1237 = vsel %vm1217, %v505, %v600
      %v1238 = vsel %vm1217, %v506, %v602
      %v1239 = vsel %vm1217, %v508, %v604
      %v1240 = vsel %vm1217, %v509, %v606
      %v1241 = vsel %vm1217, %v510, %v608
      %vm1242 = vcmask 64512
      %v1243 = vsel %vm1242, %v1218, %v683
      %v1244 = vsel %vm1242, %v1219, %v685
      %v1245 = vsel %vm1242, %v1220, %v687
      %v1246 = vsel %vm1242, %v1221, %v689
      %v1247 = vsel %vm1242, %v1222, %v691
      %v1248 = vsel %vm1242, %v1223, %v693
      %v1249 = vsel %vm1242, %v1224, %v695
      %v1250 = vsel %vm1242, %v1225, %v697
      %v1251 = vsel %vm1242, %v1226, %v699
      %v1252 = vsel %vm1242, %v1227, %v701
      %v1253 = vsel %vm1242, %v1228, %v703
      %v1254 = vsel %vm1242, %v1229, %v705
      %v1255 = vsel %vm1242, %v1230, %v707
      %v1256 = vsel %vm1242, %v1231, %v709
      %v1257 = vsel %vm1242, %v1232, %v711
      %v1258 = vsel %vm1242, %v1233, %v713
      %v1259 = vsel %vm1242, %v1234, %v715
      %v1260 = vsel %vm1242, %v1235, %v717
      %v1261 = vsel %vm1242, %v1236, %v719
      %v1262 = vsel %vm1242, %v1237, %v721
      %v1263 = vsel %vm1242, %v1238, %v723
      %v1264 = vsel %vm1242, %v1239, %v725
      %v1265 = vsel %vm1242, %v1240, %v727
      %v1266 = vsel %vm1242, %v1241, %v729
      %vm1267 = vcmask 97280
      %v1268 = vsel %vm1267, %v1243, %v765
      %v1269 = vsel %vm1267, %v1244, %v767
      %v1270 = vsel %vm1267, %v1245, %v769
      %v1271 = vsel %vm1267, %v1246, %v771
      %v1272 = vsel %vm1267, %v1247, %v773
      %v1273 = vsel %vm1267, %v1248, %v775
      %v1274 = vsel %vm1267, %v1249, %v777
      %v1275 = vsel %vm1267, %v1250, %v779
      %v1276 = vsel %vm1267, %v1251, %v781
      %v1277 = vsel %vm1267, %v1252, %v783
      %v1278 = vsel %vm1267, %v1253, %v785
      %v1279 = vsel %vm1267, %v1254, %v787
      %v1280 = vsel %vm1267, %v1255, %v789
      %v1281 = vsel %vm1267, %v1256, %v791
      %v1282 = vsel %vm1267, %v1257, %v793
      %v1283 = vsel %vm1267, %v1258, %v795
      %v1284 = vsel %vm1267, %v1259, %v797
      %v1285 = vsel %vm1267, %v1260, %v799
      %v1286 = vsel %vm1267, %v1261, %v801
      %v1287 = vsel %vm1267, %v1262, %v803
      %v1288 = vsel %vm1267, %v1263, %v805
      %v1289 = vsel %vm1267, %v1264, %v807
      %v1290 = vsel %vm1267, %v1265, %v809
      %v1291 = vsel %vm1267, %v1266, %v811
      %vm1292 = vcmask 130048
      %v1293 = vsel %vm1292, %v1268, %v840
      %v1294 = vsel %vm1292, %v1269, %v842
      %v1295 = vsel %vm1292, %v1270, %v844
      %v1296 = vsel %vm1292, %v1271, %v846
      %v1297 = vsel %vm1292, %v1272, %v848
      %v1298 = vsel %vm1292, %v1273, %v850
      %v1299 = vsel %vm1292, %v1274, %v852
      %v1300 = vsel %vm1292, %v1275, %v854
      %v1301 = vsel %vm1292, %v1276, %v856
      %v1302 = vsel %vm1292, %v1277, %v858
      %v1303 = vsel %vm1292, %v1278, %v860
      %v1304 = vsel %vm1292, %v1279, %v862
      %v1305 = vsel %vm1292, %v1280, %v864
      %v1306 = vsel %vm1292, %v1281, %v866
      %v1307 = vsel %vm1292, %v1282, %v868
      %v1308 = vsel %vm1292, %v1283, %v870
      %v1309 = vsel %vm1292, %v1284, %v872
      %v1310 = vsel %vm1292, %v1285, %v874
      %v1311 = vsel %vm1292, %v1286, %v876
      %v1312 = vsel %vm1292, %v1287, %v878
      %v1313 = vsel %vm1292, %v1288, %v880
      %v1314 = vsel %vm1292, %v1289, %v882
      %v1315 = vsel %vm1292, %v1290, %v884
      %v1316 = vsel %vm1292, %v1291, %v886
      %vm1317 = vcmask 162816
      %v1318 = vsel %vm1317, %v1293, %v918
      %v1319 = vsel %vm1317, %v1294, %v920
      %v1320 = vsel %vm1317, %v1295, %v922
      %v1321 = vsel %vm1317, %v1296, %v924
      %v1322 = vsel %vm1317, %v1297, %v926
      %v1323 = vsel %vm1317, %v1298, %v928
      %v1324 = vsel %vm1317, %v1299, %v930
      %v1325 = vsel %vm1317, %v1300, %v932
      %v1326 = vsel %vm1317, %v1301, %v934
      %v1327 = vsel %vm1317, %v1302, %v936
      %v1328 = vsel %vm1317, %v1303, %v938
      %v1329 = vsel %vm1317, %v1304, %v940
      %v1330 = vsel %vm1317, %v1305, %v942
      %v1331 = vsel %vm1317, %v1306, %v944
      %v1332 = vsel %vm1317, %v1307, %v946
      %v1333 = vsel %vm1317, %v1308, %v948
      %v1334 = vsel %vm1317, %v1309, %v950
      %v1335 = vsel %vm1317, %v1310, %v952
      %v1336 = vsel %vm1317, %v1311, %v954
      %v1337 = vsel %vm1317, %v1312, %v956
      %v1338 = vsel %vm1317, %v1313, %v958
      %v1339 = vsel %vm1317, %v1314, %v960
      %v1340 = vsel %vm1317, %v1315, %v962
      %v1341 = vsel %vm1317, %v1316, %v964
      %vm1342 = vcmask 195584
      %v1343 = vsel %vm1342, %v1318, %v993
      %v1344 = vsel %vm1342, %v1319, %v995
      %v1345 = vsel %vm1342, %v1320, %v997
      %v1346 = vsel %vm1342, %v1321, %v999
      %v1347 = vsel %vm1342, %v1322, %v1001
      %v1348 = vsel %vm1342, %v1323, %v1003
      %v1349 = vsel %vm1342, %v1324, %v1005
      %v1350 = vsel %vm1342, %v1325, %v1007
      %v1351 = vsel %vm1342, %v1326, %v1009
      %v1352 = vsel %vm1342, %v1327, %v1011
      %v1353 = vsel %vm1342, %v1328, %v1013
      %v1354 = vsel %vm1342, %v1329, %v1015
      %v1355 = vsel %vm1342, %v1330, %v1017
      %v1356 = vsel %vm1342, %v1331, %v1019
      %v1357 = vsel %vm1342, %v1332, %v1021
      %v1358 = vsel %vm1342, %v1333, %v1023
      %v1359 = vsel %vm1342, %v1334, %v1025
      %v1360 = vsel %vm1342, %v1335, %v1027
      %v1361 = vsel %vm1342, %v1336, %v1029
      %v1362 = vsel %vm1342, %v1337, %v1031
      %v1363 = vsel %vm1342, %v1338, %v1033
      %v1364 = vsel %vm1342, %v1339, %v1035
      %v1365 = vsel %vm1342, %v1340, %v1037
      %v1366 = vsel %vm1342, %v1341, %v1039
      %vm1367 = vcmask 228352
      %v1368 = vsel %vm1367, %v1343, %v1068
      %v1369 = vsel %vm1367, %v1344, %v1070
      %v1370 = vsel %vm1367, %v1345, %v1072
      %v1371 = vsel %vm1367, %v1346, %v1074
      %v1372 = vsel %vm1367, %v1347, %v1076
      %v1373 = vsel %vm1367, %v1348, %v1078
      %v1374 = vsel %vm1367, %v1349, %v1080
      %v1375 = vsel %vm1367, %v1350, %v1082
      %v1376 = vsel %vm1367, %v1351, %v1084
      %v1377 = vsel %vm1367, %v1352, %v1086
      %v1378 = vsel %vm1367, %v1353, %v1088
      %v1379 = vsel %vm1367, %v1354, %v1090
      %v1380 = vsel %vm1367, %v1355, %v1092
      %v1381 = vsel %vm1367, %v1356, %v1094
      %v1382 = vsel %vm1367, %v1357, %v1096
      %v1383 = vsel %vm1367, %v1358, %v1098
      %v1384 = vsel %vm1367, %v1359, %v1100
      %v1385 = vsel %vm1367, %v1360, %v1102
      %v1386 = vsel %vm1367, %v1361, %v1104
      %v1387 = vsel %vm1367, %v1362, %v1106
      %v1388 = vsel %vm1367, %v1363, %v1108
      %v1389 = vsel %vm1367, %v1364, %v1110
      %v1390 = vsel %vm1367, %v1365, %v1112
      %v1391 = vsel %vm1367, %v1366, %v1114
      %vm1392 = vcmask 261120
      %v1393 = vsel %vm1392, %v1368, %v1146
      %v1394 = vsel %vm1392, %v1369, %v1148
      %v1395 = vsel %vm1392, %v1370, %v1150
      %v1396 = vsel %vm1392, %v1371, %v1152
      %v1397 = vsel %vm1392, %v1372, %v1154
      %v1398 = vsel %vm1392, %v1373, %v1156
      %v1399 = vsel %vm1392, %v1374, %v1158
      %v1400 = vsel %vm1392, %v1375, %v1160
      %v1401 = vsel %vm1392, %v1376, %v1162
      %v1402 = vsel %vm1392, %v1377, %v1164
      %v1403 = vsel %vm1392, %v1378, %v1166
      %v1404 = vsel %vm1392, %v1379, %v1168
      %v1405 = vsel %vm1392, %v1380, %v1170
      %v1406 = vsel %vm1392, %v1381, %v1172
      %v1407 = vsel %vm1392, %v1382, %v1174
      %v1408 = vsel %vm1392, %v1383, %v1176
      %v1409 = vsel %vm1392, %v1384, %v1178
      %v1410 = vsel %vm1392, %v1385, %v1180
      %v1411 = vsel %vm1392, %v1386, %v1182
      %v1412 = vsel %vm1392, %v1387, %v1184
      %v1413 = vsel %vm1392, %v1388, %v1186
      %v1414 = vsel %vm1392, %v1389, %v1188
      %v1415 = vsel %vm1392, %v1390, %v1190
      %v1416 = vsel %vm1392, %v1391, %v1192
      %vm1441 = vcmask 1040384
      %v1442 = vrot.slane %v1393, 7
      %v1443 = vrot.slane %v1394, 7
      %v1444 = vsel %vm1441, %v1442, %v1443
      %v1445 = vrot.slane %v1395, 7
      %v1446 = vsel %vm1441, %v1443, %v1445
      %v1447 = vrot.slane %v1396, 7
      %v1448 = vrot.slane %v1397, 7
      %v1449 = vsel %vm1441, %v1447, %v1448
      %v1450 = vrot.slane %v1398, 7
      %v1451 = vsel %vm1441, %v1448, %v1450
      %v1452 = vrot.slane %v1399, 7
      %v1453 = vrot.slane %v1400, 7
      %v1454 = vsel %vm1441, %v1452, %v1453
      %v1455 = vrot.slane %v1401, 7
      %v1456 = vsel %vm1441, %v1453, %v1455
      %v1457 = vrot.slane %v1402, 7
      %v1458 = vrot.slane %v1403, 7
      %v1459 = vsel %vm1441, %v1457, %v1458
      %v1460 = vrot.slane %v1404, 7
      %v1461 = vsel %vm1441, %v1458, %v1460
      %v1462 = vrot.slane %v1405, 7
      %v1463 = vrot.slane %v1406, 7
      %v1464 = vsel %vm1441, %v1462, %v1463
      %v1465 = vrot.slane %v1407, 7
      %v1466 = vsel %vm1441, %v1463, %v1465
      %v1467 = vrot.slane %v1408, 7
      %v1468 = vrot.slane %v1409, 7
      %v1469 = vsel %vm1441, %v1467, %v1468
      %v1470 = vrot.slane %v1410, 7
      %v1471 = vsel %vm1441, %v1468, %v1470
      %v1472 = vrot.slane %v1411, 7
      %v1473 = vrot.slane %v1412, 7
      %v1474 = vsel %vm1441, %v1472, %v1473
      %v1475 = vrot.slane %v1413, 7
      %v1476 = vsel %vm1441, %v1473, %v1475
      %v1477 = vrot.slane %v1414, 7
      %v1478 = vrot.slane %v1415, 7
      %v1479 = vsel %vm1441, %v1477, %v1478
      %v1480 = vrot.slane %v1416, 7
      %v1481 = vsel %vm1441, %v1478, %v1480
      %v1482 = vld [vmem:[%s3] sm:$0xff]
      %v1483 = vld [vmem:[%s3 + $0x8] sm:$0xff]
      %v1484 = vld [vmem:[%s3 + $0x10] sm:$0xff]
      %v1485 = vld [vmem:[%s3 + $0x18] sm:$0xff]
      %v1486 = vld [vmem:[%s3 + $0x20] sm:$0xf]
      %vm1487 = vcmask 293888
      %v1488 = vsel %vm1487, %v1444, 0
      %v1490 = vsel %vm1487, %v1446, 0
      %v1492 = vsel %vm1487, %v1449, 0
      %v1494 = vsel %vm1487, %v1451, 0
      %v1496 = vsel %vm1487, %v1454, 0
      %v1498 = vsel %vm1487, %v1456, 0
      %v1500 = vsel %vm1487, %v1459, 0
      %v1502 = vsel %vm1487, %v1461, 0
      %v1504 = vsel %vm1487, %v1464, 0
      %v1506 = vsel %vm1487, %v1466, 0
      %v1508 = vsel %vm1487, %v1469, 0
      %v1510 = vsel %vm1487, %v1471, 0
      %v1512 = vsel %vm1487, %v1474, 0
      %v1514 = vsel %vm1487, %v1476, 0
      %v1516 = vsel %vm1487, %v1479, 0
      %v1518 = vsel %vm1487, %v1481, 0
      %vm1520 = vcmask 1043456
      %v1522 = vsel %vm1520, %v1486, 0
      %1524 = vmatpush.msra.mxu0 0.0
      %1525 = vmatpush.msra.mxu0 0.0
      %1526 = vmatpush.msra.mxu0 0.0
      %1527 = vmatpush.msra.mxu0 0.0
      %1528 = vmatpush.msra.mxu0 0.0
      %1529 = vmatpush.msra.mxu0 0.0
      %1530 = vmatpush.msra.mxu0 0.0
      %1531 = vmatpush.msra.mxu0 0.0
      %1532 = vmatpush.msra.mxu0 0.0
      %1533 = vmatpush.msra.mxu0 0.0
      %1534 = vmatpush.msra.mxu0 0.0
      %1535 = vmatpush.msra.mxu0 %v1522
      %1536 = vmatpush.msra.mxu0 %v1485
      %1537 = vmatpush.msra.mxu0 %v1484
      %1538 = vmatpush.msra.mxu0 %v1483
      %1539 = vmatpush.msra.mxu0 %v1482
      %1540 = vmatmul.f32.gmra.mxu0 %v1488
      %v1541 = vpop.f32.mrf.mxu0
      %v1542 = vadd.f32 0.0, %v1541
      %1543 = vmatmul.f32.gmra.mxu0 %v1490
      %v1544 = vpop.f32.mrf.mxu0
      %v1545 = vadd.f32 0.0, %v1544
      %1546 = vmatmul.f32.gmra.mxu0 %v1492
      %v1547 = vpop.f32.mrf.mxu0
      %v1548 = vadd.f32 0.0, %v1547
      %1549 = vmatmul.f32.gmra.mxu0 %v1494
      %v1550 = vpop.f32.mrf.mxu0
      %v1551 = vadd.f32 0.0, %v1550
      %1552 = vmatmul.f32.gmra.mxu0 %v1496
      %v1553 = vpop.f32.mrf.mxu0
      %v1554 = vadd.f32 0.0, %v1553
      %1555 = vmatmul.f32.gmra.mxu0 %v1498
      %v1556 = vpop.f32.mrf.mxu0
      %v1557 = vadd.f32 0.0, %v1556
      %1558 = vmatmul.f32.gmra.mxu0 %v1500
      %v1559 = vpop.f32.mrf.mxu0
      %v1560 = vadd.f32 0.0, %v1559
      %1561 = vmatmul.f32.gmra.mxu0 %v1502
      %v1562 = vpop.f32.mrf.mxu0
      %v1563 = vadd.f32 0.0, %v1562
      %1564 = vmatmul.f32.gmra.mxu0 %v1504
      %v1565 = vpop.f32.mrf.mxu0
      %v1566 = vadd.f32 0.0, %v1565
      %1567 = vmatmul.f32.gmra.mxu0 %v1506
      %v1568 = vpop.f32.mrf.mxu0
      %v1569 = vadd.f32 0.0, %v1568
      %1570 = vmatmul.f32.gmra.mxu0 %v1508
      %v1571 = vpop.f32.mrf.mxu0
      %v1572 = vadd.f32 0.0, %v1571
      %1573 = vmatmul.f32.gmra.mxu0 %v1510
      %v1574 = vpop.f32.mrf.mxu0
      %v1575 = vadd.f32 0.0, %v1574
      %1576 = vmatmul.f32.gmra.mxu0 %v1512
      %v1577 = vpop.f32.mrf.mxu0
      %v1578 = vadd.f32 0.0, %v1577
      %1579 = vmatmul.f32.gmra.mxu0 %v1514
      %v1580 = vpop.f32.mrf.mxu0
      %v1581 = vadd.f32 0.0, %v1580
      %1582 = vmatmul.f32.gmra.mxu0 %v1516
      %v1583 = vpop.f32.mrf.mxu0
      %v1584 = vadd.f32 0.0, %v1583
      %1585 = vmatmul.f32.gmra.mxu0 %v1518
      %v1586 = vpop.f32.mrf.mxu0
      %v1587 = vadd.f32 0.0, %v1586
      %1588 = vdwg.mxu0
      %1589 = vst.msk [vmem:[%s219] sm:$0xff] %vm1242, %v1542
      %1590 = vst.msk [vmem:[%s219 + $0x8] sm:$0xff] %vm1242, %v1545
      %1591 = vst.msk [vmem:[%s219 + $0x10] sm:$0xff] %vm1242, %v1548
      %1592 = vst.msk [vmem:[%s219 + $0x18] sm:$0xff] %vm1242, %v1551
      %1593 = vst.msk [vmem:[%s219 + $0x20] sm:$0xff] %vm1242, %v1554
      %1594 = vst.msk [vmem:[%s219 + $0x28] sm:$0xff] %vm1242, %v1557
      %1595 = vst.msk [vmem:[%s219 + $0x30] sm:$0xff] %vm1242, %v1560
      %1596 = vst.msk [vmem:[%s219 + $0x38] sm:$0xff] %vm1242, %v1563
      %1597 = vst.msk [vmem:[%s219 + $0x40] sm:$0xff] %vm1242, %v1566
      %1598 = vst.msk [vmem:[%s219 + $0x48] sm:$0xff] %vm1242, %v1569
      %1599 = vst.msk [vmem:[%s219 + $0x50] sm:$0xff] %vm1242, %v1572
      %1600 = vst.msk [vmem:[%s219 + $0x58] sm:$0xff] %vm1242, %v1575
      %1601 = vst.msk [vmem:[%s219 + $0x60] sm:$0xff] %vm1242, %v1578
      %1602 = vst.msk [vmem:[%s219 + $0x68] sm:$0xff] %vm1242, %v1581
      %1603 = vst.msk [vmem:[%s219 + $0x70] sm:$0xff] %vm1242, %v1584
      %1604 = vst.msk [vmem:[%s219 + $0x78] sm:$0xff] %vm1242, %v1587
      %p1605 = scmp.lt.s32.totalorder %s19, 1
      %s1606 = scalar_select %p1605, %s19, 1
      %p1607 = scmp.lt.s32.totalorder %s20, 1
      %s1608 = scalar_select %p1607, %s20, 1
      %s1609 = smul.addr %s1608, 16
      %s1610 = smul.addr %s1606, 32
      %s1611 = sadd.s32 %s1609, %s1610
      %s1612 = smul.addr %s1611, 8
      %s1613 = scalar_lea.vmem %s4, %s1612
      // Predicated region
      $region45: #{tpu_custom_call.1} parent=35 // pred_check
        %p1614 = pneg %p136
      $region46: #{tpu_custom_call.1} parent=35 // pred_check_branch
        %1616 = sbr.rel (%p1614) target = $region48
      $region47: #{tpu_custom_call.1} parent=35 // pred_region
        _
      $region48: #{tpu_custom_call.1} parent=35 // pred_fallthru
        _
    $region36: #{tpu_custom_call.1} parent=5 // pred_fallthru
      _
    %p1617 = scmp.le.s32.totalorder 2, %s10
    // Predicated region
    $region49: #{tpu_custom_call.1} parent=5 // pred_check
      %p1618 = pneg %p1617
    $region50: #{tpu_custom_call.1} parent=5 // pred_check_branch
      %1620 = sbr.rel (%p1618) target = $region52
    $region51: #{tpu_custom_call.1} parent=5 // pred_region
      %s1621 = ssub.s32 %s10, 2
      // Predicated region
      $region53: #{tpu_custom_call.1} parent=51 // pred_check
        %p1622 = pneg %p142
      $region54: #{tpu_custom_call.1} parent=51 // pred_check_branch
        %1624 = sbr.rel (%p1622) target = $region56
      $region55: #{tpu_custom_call.1} parent=51 // pred_region
        %p1625 = scmp.lt.s32.totalorder %s21, 1
        %s1626 = scalar_select %p1625, %s21, 1
        %p1627 = scmp.lt.s32.totalorder %s22, 1
        %s1628 = scalar_select %p1627, %s22, 1
        %s1629 = smul.addr %s1628, 16
        %s1630 = smul.addr %s1626, 32
        %s1631 = sadd.s32 %s1629, %s1630
        %s1632 = smul.addr %s1631, 8
        %s1633 = scalar_lea.vmem %s4, %s1632
      $region56: #{tpu_custom_call.1} parent=51 // pred_fallthru
        _
    $region52: #{tpu_custom_call.1} parent=5 // pred_fallthru
      _
  $region6: #{tpu_custom_call.1} parent=0 // loop_footer
    %s14 = sadd.s32 1, %s10
  $region7: #{tpu_custom_call.1} parent=0 // loop_footer_branch
    %9 = sbr.rel target = $region3
  $region8: #{tpu_custom_call.1} parent=0 // loop_exit
    _

</llo_original>
